<compile_context>
chip_gen: v7x
topology: tpu7x:2x2x1
jax: 0.10.0
libtpu: 0.0.40
codegen_flags: <defaults>
</compile_context>

<pallas_src>
import functools

import numpy as np

import jax
import jax.numpy as jnp
from jax.experimental import pallas as pl
from jax.experimental.pallas import tpu as pltpu

# ---- model hyper-params (small, consistent with the module) ----
D_MODEL = 32
NHEAD = 4
HEAD_DIM = D_MODEL // NHEAD


# --------------------------- fused Pallas kernel ---------------------------

def _mha_kernel(q_ref, k_ref, v_ref, w_in_ref, b_in_ref, w_out_ref, b_out_ref,
                out_ref, *rest, need_weights):
    # q_ref: (B, T, E)  k_ref/v_ref: (B, S, E)   (batch-first inside the kernel)
    # w_in_ref: (E, 3E) pre-transposed, Q columns pre-scaled by head_dim**-0.5
    # b_in_ref: (1, 3E) Q part pre-scaled
    # w_out_ref: (E, E) pre-transposed, b_out_ref: (1, E)
    # outputs: out_ref (B, T, E) [+ attn_ref (B, H, T, S) if need_weights]
    # scratch: ctx_ref (B, T, E) f32
    if need_weights:
        attn_ref, ctx_ref = rest
    else:
        (ctx_ref,) = rest

    B, T, E = q_ref.shape
    S = k_ref.shape[1]
    H = NHEAD
    HD = E // H

    w_in = w_in_ref[...]          # (E, 3E) resident in VMEM
    b_in = b_in_ref[...]          # (1, 3E)

    # Fused in-projection: Q / K / V are lane-slices of the same weight slab.
    # (Scaling for Q is already folded into w_in/b_in.)
    q = jnp.dot(q_ref[...].reshape(B * T, E), w_in[:, :E],
                preferred_element_type=jnp.float32) + b_in[:, :E]
    k = jnp.dot(k_ref[...].reshape(B * S, E), w_in[:, E:2 * E],
                preferred_element_type=jnp.float32) + b_in[:, E:2 * E]
    v = jnp.dot(v_ref[...].reshape(B * S, E), w_in[:, 2 * E:],
                preferred_element_type=jnp.float32) + b_in[:, 2 * E:]
    q = q.reshape(B, T, E)
    k = k.reshape(B, S, E)
    v = v.reshape(B, S, E)

    # Scaled dot-product attention, all batches at once per head (static unroll
    # over the H=4 heads; no grid steps, no transposes - contraction is over
    # the last dims).
    for h in range(H):
        sl = slice(h * HD, (h + 1) * HD)
        s = jnp.einsum('btd,bsd->bts', q[:, :, sl], k[:, :, sl],
                       preferred_element_type=jnp.float32)        # (B, T, S)
        m = jnp.max(s, axis=-1, keepdims=True)
        p = jnp.exp(s - m)
        denom = jnp.sum(p, axis=-1, keepdims=True)
        a = p * pl.reciprocal(denom, approx=True)                  # softmax
        if need_weights:
            attn_ref[:, h:h + 1, :, :] = a.reshape(B, 1, T, S)
        ctx_ref[:, :, sl] = jnp.einsum('bts,bsd->btd', a, v[:, :, sl],
                                       preferred_element_type=jnp.float32)

    # Output projection on the merged-head context (still in VMEM).
    out = jnp.dot(ctx_ref[...].reshape(B * T, E), w_out_ref[...],
                  preferred_element_type=jnp.float32) + b_out_ref[...]
    out_ref[...] = out.reshape(B, T, E)


def multihead_attention(query, key, value, prepared, need_weights=True):
    """query: (T, B, E); key/value: (S, B, E) (torch seq-first layout).

    Returns (attn_output (T, B, E), attention (B*NHEAD, T, S) or None).
    Note: this CoMER variant of multi_head_attention_forward returns PER-HEAD
    attention weights (no head averaging), which is what we reproduce here.
    """
    T, B, E = query.shape
    S = key.shape[0]
    H = NHEAD

    # Layout plumbing only (tiny one-time transposes): batch-first slabs give
    # the kernel dense batched matmuls over all heads in a single grid step.
    qb = jnp.transpose(query, (1, 0, 2))   # (B, T, E)
    kb = jnp.transpose(key, (1, 0, 2))     # (B, S, E)
    vb = jnp.transpose(value, (1, 0, 2))   # (B, S, E)

    if need_weights:
        out_shape = (jax.ShapeDtypeStruct((B, T, E), jnp.float32),
                     jax.ShapeDtypeStruct((B, H, T, S), jnp.float32))
        out_specs = (pl.BlockSpec((B, T, E), lambda i: (0, 0, 0)),
                     pl.BlockSpec((B, H, T, S), lambda i: (0, 0, 0, 0)))
    else:
        out_shape = jax.ShapeDtypeStruct((B, T, E), jnp.float32)
        out_specs = pl.BlockSpec((B, T, E), lambda i: (0, 0, 0))

    res = pl.pallas_call(
        functools.partial(_mha_kernel, need_weights=need_weights),
        out_shape=out_shape,
        grid=(1,),
        in_specs=[
            pl.BlockSpec((B, T, E), lambda i: (0, 0, 0)),
            pl.BlockSpec((B, S, E), lambda i: (0, 0, 0)),
            pl.BlockSpec((B, S, E), lambda i: (0, 0, 0)),
            pl.BlockSpec((E, 3 * E), lambda i: (0, 0)),
            pl.BlockSpec((1, 3 * E), lambda i: (0, 0)),
            pl.BlockSpec((E, E), lambda i: (0, 0)),
            pl.BlockSpec((1, E), lambda i: (0, 0)),
        ],
        out_specs=out_specs,
        scratch_shapes=[pltpu.VMEM((B, T, E), jnp.float32)],
        compiler_params=pltpu.CompilerParams(
            dimension_semantics=("arbitrary",)),   # single step, single TC
    )(qb, kb, vb, prepared["w_in_t"], prepared["b_in"],
      prepared["w_out_t"], prepared["b_out"])

    if need_weights:
        out_b, attn_b = res
        attn = attn_b.reshape(B * H, T, S)
    else:
        out_b, attn = res, None
    return jnp.transpose(out_b, (1, 0, 2)), attn


# --------------------------- params ---------------------------

def _xavier_uniform(key, shape):
    fan_out, fan_in = shape[0], shape[1]
    limit = (6.0 / (fan_in + fan_out)) ** 0.5
    return jax.random.uniform(key, shape, jnp.float32, -limit, limit)


def init_params(key):
    """Torch-layout MHA parameters (in_proj_weight (3E,E), out_proj (E,E))."""
    k1, k2 = jax.random.split(key)
    return {
        "in_proj_weight": _xavier_uniform(k1, (3 * D_MODEL, D_MODEL)),
        "in_proj_bias": jnp.zeros((3 * D_MODEL,), jnp.float32),
        "out_proj_weight": _xavier_uniform(k2, (D_MODEL, D_MODEL)),
        "out_proj_bias": jnp.zeros((D_MODEL,), jnp.float32),
    }


def prepare_mha_params(p):
    """One-time weight prep: transpose to (K,N) layout and fold the
    1/sqrt(head_dim) scaling into the Q columns of the fused in_proj."""
    E = D_MODEL
    scaling = float(HEAD_DIM) ** (-0.5)
    col_scale = jnp.concatenate(
        [jnp.full((E,), scaling, jnp.float32), jnp.ones((2 * E,), jnp.float32)])
    w_in_t = jnp.transpose(p["in_proj_weight"]) * col_scale[None, :]   # (E, 3E)
    b_in = (p["in_proj_bias"] * col_scale).reshape(1, 3 * E)
    return {
        "w_in_t": w_in_t,
        "b_in": b_in,
        "w_out_t": jnp.transpose(p["out_proj_weight"]),                # (E, E)
        "b_out": p["out_proj_bias"].reshape(1, E),
    }


# --------------------------- pure-JAX reference ---------------------------

def mha_reference(query, key, value, p):
    T, B, E = query.shape
    S = key.shape[0]
    H, HD = NHEAD, HEAD_DIM
    w, b = p["in_proj_weight"], p["in_proj_bias"]
    q = query @ w[:E].T + b[:E]
    k = key @ w[E:2 * E].T + b[E:2 * E]
    v = value @ w[2 * E:].T + b[2 * E:]
    q = q * (float(HD) ** (-0.5))
    qh = jnp.transpose(q.reshape(T, B * H, HD), (1, 0, 2))
    kh = jnp.transpose(k.reshape(S, B * H, HD), (1, 0, 2))
    vh = jnp.transpose(v.reshape(S, B * H, HD), (1, 0, 2))
    s = jnp.einsum('bqd,bkd->bqk', qh, kh)
    attn = jax.nn.softmax(s, axis=-1)
    o = jnp.einsum('bqk,bkd->bqd', attn, vh)
    o = jnp.transpose(o, (1, 0, 2)).reshape(T, B, E)
    out = o @ p["out_proj_weight"].T + p["out_proj_bias"]
    return out, attn


# TODO(synk): attn_mask / key_padding_mask, the ARM refinement branch,
# bias_k/bias_v, add_zero_attn and training-mode dropout (>0) are not
# implemented; module defaults (None / False / dropout=0.0) are reproduced.


if __name__ == "__main__":
    key0 = jax.random.PRNGKey(0)
    kq, km, kp = jax.random.split(key0, 3)

    TGT_LEN, SRC_LEN, BATCH = 8, 16, 2
    query = jax.random.normal(kq, (TGT_LEN, BATCH, D_MODEL), jnp.float32)
    memory = jax.random.normal(km, (SRC_LEN, BATCH, D_MODEL), jnp.float32)

    params = init_params(kp)
    prepared = prepare_mha_params(params)

    # cross-attention style call (key is value), need_weights=True (default)
    fwd = jax.jit(functools.partial(multihead_attention, need_weights=True))
    out, attn = fwd(query, memory, memory, prepared)
    jax.block_until_ready((out, attn))

    assert out.shape == (TGT_LEN, BATCH, D_MODEL)
    assert attn.shape == (BATCH * NHEAD, TGT_LEN, SRC_LEN)

    ref_out, ref_attn = mha_reference(query, memory, memory, params)
    np.testing.assert_allclose(np.asarray(out), np.asarray(ref_out),
                               rtol=5e-2, atol=5e-2)
    np.testing.assert_allclose(np.asarray(attn), np.asarray(ref_attn),
                               rtol=5e-2, atol=5e-2)

    # self-attention call with need_weights=False: the attention-weights
    # output (and its writeback) is skipped entirely.
    fwd_nw = jax.jit(functools.partial(multihead_attention, need_weights=False))
    out2, attn2 = fwd_nw(query, query, query, prepared)
    jax.block_until_ready(out2)
    assert attn2 is None and out2.shape == (TGT_LEN, BATCH, D_MODEL)

    print("KERNEL_OK")
</pallas_src>

<mosaic_0001>
module attributes {stable_mosaic.version = 11 : i64} {
  func.func @_mha_kernel(%arg0: i32, %arg1: memref<2x8x32xf32, #tpu.memory_space<vmem>>, %arg2: memref<2x16x32xf32, #tpu.memory_space<vmem>>, %arg3: memref<2x16x32xf32, #tpu.memory_space<vmem>>, %arg4: memref<32x96xf32, #tpu.memory_space<vmem>>, %arg5: memref<1x96xf32, #tpu.memory_space<vmem>>, %arg6: memref<32x32xf32, #tpu.memory_space<vmem>>, %arg7: memref<1x32xf32, #tpu.memory_space<vmem>>, %arg8: memref<2x8x32xf32, #tpu.memory_space<vmem>>, %arg9: memref<2x4x8x16xf32, #tpu.memory_space<vmem>>, %arg10: memref<2x8x32xf32, #tpu.memory_space<vmem>>) attributes {dimension_semantics = [#tpu.dimension_semantics<arbitrary>], iteration_bounds = array<i64: 1>, scalar_prefetch = 0 : i64, scratch_operands = 1 : i64, tpu.core_type = #tpu.core_type<tc>, window_params = [{pipeline_mode = #tpu.pipeline_mode<synchronous>, transform_indices = @transform_0, window_bounds = array<i64: 2, 8, 32>}, {pipeline_mode = #tpu.pipeline_mode<synchronous>, transform_indices = @transform_1, window_bounds = array<i64: 2, 16, 32>}, {pipeline_mode = #tpu.pipeline_mode<synchronous>, transform_indices = @transform_2, window_bounds = array<i64: 2, 16, 32>}, {pipeline_mode = #tpu.pipeline_mode<synchronous>, transform_indices = @transform_3, window_bounds = array<i64: 32, 96>}, {pipeline_mode = #tpu.pipeline_mode<synchronous>, transform_indices = @transform_4, window_bounds = array<i64: 1, 96>}, {pipeline_mode = #tpu.pipeline_mode<synchronous>, transform_indices = @transform_5, window_bounds = array<i64: 32, 32>}, {pipeline_mode = #tpu.pipeline_mode<synchronous>, transform_indices = @transform_6, window_bounds = array<i64: 1, 32>}, {pipeline_mode = #tpu.pipeline_mode<synchronous>, transform_indices = @transform_7, window_bounds = array<i64: 2, 8, 32>}, {pipeline_mode = #tpu.pipeline_mode<synchronous>, transform_indices = @transform_8, window_bounds = array<i64: 2, 4, 8, 16>}]} {
    %c0 = arith.constant 0 : index
    %c0_0 = arith.constant 0 : index
    %0 = vector.load %arg4[%c0, %c0_0] : memref<32x96xf32, #tpu.memory_space<vmem>>, vector<32x96xf32>
    %c0_1 = arith.constant 0 : index
    %c0_2 = arith.constant 0 : index
    %1 = vector.load %arg5[%c0_1, %c0_2] : memref<1x96xf32, #tpu.memory_space<vmem>>, vector<1x96xf32>
    %c0_3 = arith.constant 0 : index
    %c0_4 = arith.constant 0 : index
    %c0_5 = arith.constant 0 : index
    %2 = vector.load %arg1[%c0_3, %c0_4, %c0_5] : memref<2x8x32xf32, #tpu.memory_space<vmem>>, vector<2x8x32xf32>
    %3 = vector.shape_cast %2 : vector<2x8x32xf32> to vector<16x32xf32>
    %4 = vector.extract_strided_slice %0 {offsets = [0, 0], sizes = [32, 32], strides = [1, 1]} : vector<32x96xf32> to vector<32x32xf32>
    %cst = arith.constant dense<0.000000e+00> : vector<16x32xf32>
    %5 = tpu.matmul %3, %4, %cst {dimension_numbers = #tpu.dot_dimension_numbers<[1], [0], [0], [1], [0, 0, 1, 1], [], []>} : vector<16x32xf32>, vector<32x32xf32>, vector<16x32xf32> -> vector<16x32xf32>
    %6 = vector.extract_strided_slice %1 {offsets = [0, 0], sizes = [1, 32], strides = [1, 1]} : vector<1x96xf32> to vector<1x32xf32>
    %7 = vector.broadcast %6 : vector<1x32xf32> to vector<16x32xf32>
    %8 = arith.addf %5, %7 : vector<16x32xf32>
    %c0_6 = arith.constant 0 : index
    %c0_7 = arith.constant 0 : index
    %c0_8 = arith.constant 0 : index
    %9 = vector.load %arg2[%c0_6, %c0_7, %c0_8] : memref<2x16x32xf32, #tpu.memory_space<vmem>>, vector<2x16x32xf32>
    %10 = vector.shape_cast %9 : vector<2x16x32xf32> to vector<32x32xf32>
    %11 = vector.extract_strided_slice %0 {offsets = [0, 32], sizes = [32, 32], strides = [1, 1]} : vector<32x96xf32> to vector<32x32xf32>
    %cst_9 = arith.constant dense<0.000000e+00> : vector<32x32xf32>
    %12 = tpu.matmul %10, %11, %cst_9 {dimension_numbers = #tpu.dot_dimension_numbers<[1], [0], [0], [1], [0, 0, 1, 1], [], []>} : vector<32x32xf32>, vector<32x32xf32>, vector<32x32xf32> -> vector<32x32xf32>
    %13 = vector.extract_strided_slice %1 {offsets = [0, 32], sizes = [1, 32], strides = [1, 1]} : vector<1x96xf32> to vector<1x32xf32>
    %14 = vector.broadcast %13 : vector<1x32xf32> to vector<32x32xf32>
    %15 = arith.addf %12, %14 : vector<32x32xf32>
    %c0_10 = arith.constant 0 : index
    %c0_11 = arith.constant 0 : index
    %c0_12 = arith.constant 0 : index
    %16 = vector.load %arg3[%c0_10, %c0_11, %c0_12] : memref<2x16x32xf32, #tpu.memory_space<vmem>>, vector<2x16x32xf32>
    %17 = vector.shape_cast %16 : vector<2x16x32xf32> to vector<32x32xf32>
    %18 = vector.extract_strided_slice %0 {offsets = [0, 64], sizes = [32, 32], strides = [1, 1]} : vector<32x96xf32> to vector<32x32xf32>
    %cst_13 = arith.constant dense<0.000000e+00> : vector<32x32xf32>
    %19 = tpu.matmul %17, %18, %cst_13 {dimension_numbers = #tpu.dot_dimension_numbers<[1], [0], [0], [1], [0, 0, 1, 1], [], []>} : vector<32x32xf32>, vector<32x32xf32>, vector<32x32xf32> -> vector<32x32xf32>
    %20 = vector.extract_strided_slice %1 {offsets = [0, 64], sizes = [1, 32], strides = [1, 1]} : vector<1x96xf32> to vector<1x32xf32>
    %21 = vector.broadcast %20 : vector<1x32xf32> to vector<32x32xf32>
    %22 = arith.addf %19, %21 : vector<32x32xf32>
    %23 = vector.shape_cast %8 : vector<16x32xf32> to vector<2x8x32xf32>
    %24 = vector.shape_cast %15 : vector<32x32xf32> to vector<2x16x32xf32>
    %25 = vector.shape_cast %22 : vector<32x32xf32> to vector<2x16x32xf32>
    %26 = vector.extract_strided_slice %23 {offsets = [0, 0, 0], sizes = [2, 8, 8], strides = [1, 1, 1]} : vector<2x8x32xf32> to vector<2x8x8xf32>
    %27 = vector.extract_strided_slice %24 {offsets = [0, 0, 0], sizes = [2, 16, 8], strides = [1, 1, 1]} : vector<2x16x32xf32> to vector<2x16x8xf32>
    "tpu.trace_start"() <{level = 10 : i32, message = "btd,bsd->bts"}> : () -> ()
    %cst_14 = arith.constant dense<0.000000e+00> : vector<2x8x16xf32>
    %28 = tpu.matmul %26, %27, %cst_14 {dimension_numbers = #tpu.dot_dimension_numbers<[2], [2], [1], [1], [0, 0, 0, 1, 1, 1], [0], [0]>} : vector<2x8x8xf32>, vector<2x16x8xf32>, vector<2x8x16xf32> -> vector<2x8x16xf32>
    "tpu.trace_stop"() : () -> ()
    %cst_15 = arith.constant dense<0xFF800000> : vector<2x8xf32>
    %29 = vector.multi_reduction <maximumf>, %28, %cst_15 [2] : vector<2x8x16xf32> to vector<2x8xf32>
    %30 = vector.shape_cast %29 : vector<2x8xf32> to vector<2x8x1xf32>
    %31 = vector.broadcast %30 : vector<2x8x1xf32> to vector<2x8x16xf32>
    %32 = arith.subf %28, %31 : vector<2x8x16xf32>
    %33 = math.exp %32 : vector<2x8x16xf32>
    %cst_16 = arith.constant dense<0.000000e+00> : vector<2x8xf32>
    %34 = vector.multi_reduction <add>, %33, %cst_16 [2] : vector<2x8x16xf32> to vector<2x8xf32>
    %35 = vector.shape_cast %34 : vector<2x8xf32> to vector<2x8x1xf32>
    %36 = tpu.reciprocal %35 {approx = true} : vector<2x8x1xf32> -> vector<2x8x1xf32>
    %37 = vector.broadcast %36 : vector<2x8x1xf32> to vector<2x8x16xf32>
    %38 = arith.mulf %33, %37 : vector<2x8x16xf32>
    %39 = vector.shape_cast %38 : vector<2x8x16xf32> to vector<2x1x8x16xf32>
    %c0_17 = arith.constant 0 : index
    %c0_18 = arith.constant 0 : index
    %c0_19 = arith.constant 0 : index
    %c0_20 = arith.constant 0 : index
    %40 = vector.load %arg9[%c0_17, %c0_18, %c0_19, %c0_20] : memref<2x4x8x16xf32, #tpu.memory_space<vmem>>, vector<2x1x8x16xf32>
    tpu.vector_store %arg9[%c0_17, %c0_18, %c0_19, %c0_20], %39 {strides = array<i32>} : memref<2x4x8x16xf32, #tpu.memory_space<vmem>>, vector<2x1x8x16xf32>,
    %41 = vector.extract_strided_slice %25 {offsets = [0, 0, 0], sizes = [2, 16, 8], strides = [1, 1, 1]} : vector<2x16x32xf32> to vector<2x16x8xf32>
    "tpu.trace_start"() <{level = 10 : i32, message = "bts,bsd->btd"}> : () -> ()
    %cst_21 = arith.constant dense<0.000000e+00> : vector<2x8x8xf32>
    %42 = tpu.matmul %38, %41, %cst_21 {dimension_numbers = #tpu.dot_dimension_numbers<[2], [1], [1], [2], [0, 0, 0, 1, 1, 2], [0], [0]>} : vector<2x8x16xf32>, vector<2x16x8xf32>, vector<2x8x8xf32> -> vector<2x8x8xf32>
    "tpu.trace_stop"() : () -> ()
    %c0_22 = arith.constant 0 : index
    %c0_23 = arith.constant 0 : index
    %c0_24 = arith.constant 0 : index
    %43 = vector.load %arg10[%c0_22, %c0_23, %c0_24] : memref<2x8x32xf32, #tpu.memory_space<vmem>>, vector<2x8x8xf32>
    tpu.vector_store %arg10[%c0_22, %c0_23, %c0_24], %42 {strides = array<i32>} : memref<2x8x32xf32, #tpu.memory_space<vmem>>, vector<2x8x8xf32>,
    %44 = vector.extract_strided_slice %23 {offsets = [0, 0, 8], sizes = [2, 8, 8], strides = [1, 1, 1]} : vector<2x8x32xf32> to vector<2x8x8xf32>
    %45 = vector.extract_strided_slice %24 {offsets = [0, 0, 8], sizes = [2, 16, 8], strides = [1, 1, 1]} : vector<2x16x32xf32> to vector<2x16x8xf32>
    "tpu.trace_start"() <{level = 10 : i32, message = "btd,bsd->bts"}> : () -> ()
    %cst_25 = arith.constant dense<0.000000e+00> : vector<2x8x16xf32>
    %46 = tpu.matmul %44, %45, %cst_25 {dimension_numbers = #tpu.dot_dimension_numbers<[2], [2], [1], [1], [0, 0, 0, 1, 1, 1], [0], [0]>} : vector<2x8x8xf32>, vector<2x16x8xf32>, vector<2x8x16xf32> -> vector<2x8x16xf32>
    "tpu.trace_stop"() : () -> ()
    %cst_26 = arith.constant dense<0xFF800000> : vector<2x8xf32>
    %47 = vector.multi_reduction <maximumf>, %46, %cst_26 [2] : vector<2x8x16xf32> to vector<2x8xf32>
    %48 = vector.shape_cast %47 : vector<2x8xf32> to vector<2x8x1xf32>
    %49 = vector.broadcast %48 : vector<2x8x1xf32> to vector<2x8x16xf32>
    %50 = arith.subf %46, %49 : vector<2x8x16xf32>
    %51 = math.exp %50 : vector<2x8x16xf32>
    %cst_27 = arith.constant dense<0.000000e+00> : vector<2x8xf32>
    %52 = vector.multi_reduction <add>, %51, %cst_27 [2] : vector<2x8x16xf32> to vector<2x8xf32>
    %53 = vector.shape_cast %52 : vector<2x8xf32> to vector<2x8x1xf32>
    %54 = tpu.reciprocal %53 {approx = true} : vector<2x8x1xf32> -> vector<2x8x1xf32>
    %55 = vector.broadcast %54 : vector<2x8x1xf32> to vector<2x8x16xf32>
    %56 = arith.mulf %51, %55 : vector<2x8x16xf32>
    %57 = vector.shape_cast %56 : vector<2x8x16xf32> to vector<2x1x8x16xf32>
    %c0_28 = arith.constant 0 : index
    %c1 = arith.constant 1 : index
    %c0_29 = arith.constant 0 : index
    %c0_30 = arith.constant 0 : index
    %58 = vector.load %arg9[%c0_28, %c1, %c0_29, %c0_30] : memref<2x4x8x16xf32, #tpu.memory_space<vmem>>, vector<2x1x8x16xf32>
    tpu.vector_store %arg9[%c0_28, %c1, %c0_29, %c0_30], %57 {strides = array<i32>} : memref<2x4x8x16xf32, #tpu.memory_space<vmem>>, vector<2x1x8x16xf32>,
    %59 = vector.extract_strided_slice %25 {offsets = [0, 0, 8], sizes = [2, 16, 8], strides = [1, 1, 1]} : vector<2x16x32xf32> to vector<2x16x8xf32>
    "tpu.trace_start"() <{level = 10 : i32, message = "bts,bsd->btd"}> : () -> ()
    %cst_31 = arith.constant dense<0.000000e+00> : vector<2x8x8xf32>
    %60 = tpu.matmul %56, %59, %cst_31 {dimension_numbers = #tpu.dot_dimension_numbers<[2], [1], [1], [2], [0, 0, 0, 1, 1, 2], [0], [0]>} : vector<2x8x16xf32>, vector<2x16x8xf32>, vector<2x8x8xf32> -> vector<2x8x8xf32>
    "tpu.trace_stop"() : () -> ()
    %c0_32 = arith.constant 0 : index
    %c0_33 = arith.constant 0 : index
    %c8 = arith.constant 8 : index
    %61 = vector.load %arg10[%c0_32, %c0_33, %c8] : memref<2x8x32xf32, #tpu.memory_space<vmem>>, vector<2x8x8xf32>
    tpu.vector_store %arg10[%c0_32, %c0_33, %c8], %60 {strides = array<i32>} : memref<2x8x32xf32, #tpu.memory_space<vmem>>, vector<2x8x8xf32>,
    %62 = vector.extract_strided_slice %23 {offsets = [0, 0, 16], sizes = [2, 8, 8], strides = [1, 1, 1]} : vector<2x8x32xf32> to vector<2x8x8xf32>
    %63 = vector.extract_strided_slice %24 {offsets = [0, 0, 16], sizes = [2, 16, 8], strides = [1, 1, 1]} : vector<2x16x32xf32> to vector<2x16x8xf32>
    "tpu.trace_start"() <{level = 10 : i32, message = "btd,bsd->bts"}> : () -> ()
    %cst_34 = arith.constant dense<0.000000e+00> : vector<2x8x16xf32>
    %64 = tpu.matmul %62, %63, %cst_34 {dimension_numbers = #tpu.dot_dimension_numbers<[2], [2], [1], [1], [0, 0, 0, 1, 1, 1], [0], [0]>} : vector<2x8x8xf32>, vector<2x16x8xf32>, vector<2x8x16xf32> -> vector<2x8x16xf32>
    "tpu.trace_stop"() : () -> ()
    %cst_35 = arith.constant dense<0xFF800000> : vector<2x8xf32>
    %65 = vector.multi_reduction <maximumf>, %64, %cst_35 [2] : vector<2x8x16xf32> to vector<2x8xf32>
    %66 = vector.shape_cast %65 : vector<2x8xf32> to vector<2x8x1xf32>
    %67 = vector.broadcast %66 : vector<2x8x1xf32> to vector<2x8x16xf32>
    %68 = arith.subf %64, %67 : vector<2x8x16xf32>
    %69 = math.exp %68 : vector<2x8x16xf32>
    %cst_36 = arith.constant dense<0.000000e+00> : vector<2x8xf32>
    %70 = vector.multi_reduction <add>, %69, %cst_36 [2] : vector<2x8x16xf32> to vector<2x8xf32>
    %71 = vector.shape_cast %70 : vector<2x8xf32> to vector<2x8x1xf32>
    %72 = tpu.reciprocal %71 {approx = true} : vector<2x8x1xf32> -> vector<2x8x1xf32>
    %73 = vector.broadcast %72 : vector<2x8x1xf32> to vector<2x8x16xf32>
    %74 = arith.mulf %69, %73 : vector<2x8x16xf32>
    %75 = vector.shape_cast %74 : vector<2x8x16xf32> to vector<2x1x8x16xf32>
    %c0_37 = arith.constant 0 : index
    %c2 = arith.constant 2 : index
    %c0_38 = arith.constant 0 : index
    %c0_39 = arith.constant 0 : index
    %76 = vector.load %arg9[%c0_37, %c2, %c0_38, %c0_39] : memref<2x4x8x16xf32, #tpu.memory_space<vmem>>, vector<2x1x8x16xf32>
    tpu.vector_store %arg9[%c0_37, %c2, %c0_38, %c0_39], %75 {strides = array<i32>} : memref<2x4x8x16xf32, #tpu.memory_space<vmem>>, vector<2x1x8x16xf32>,
    %77 = vector.extract_strided_slice %25 {offsets = [0, 0, 16], sizes = [2, 16, 8], strides = [1, 1, 1]} : vector<2x16x32xf32> to vector<2x16x8xf32>
    "tpu.trace_start"() <{level = 10 : i32, message = "bts,bsd->btd"}> : () -> ()
    %cst_40 = arith.constant dense<0.000000e+00> : vector<2x8x8xf32>
    %78 = tpu.matmul %74, %77, %cst_40 {dimension_numbers = #tpu.dot_dimension_numbers<[2], [1], [1], [2], [0, 0, 0, 1, 1, 2], [0], [0]>} : vector<2x8x16xf32>, vector<2x16x8xf32>, vector<2x8x8xf32> -> vector<2x8x8xf32>
    "tpu.trace_stop"() : () -> ()
    %c0_41 = arith.constant 0 : index
    %c0_42 = arith.constant 0 : index
    %c16 = arith.constant 16 : index
    %79 = vector.load %arg10[%c0_41, %c0_42, %c16] : memref<2x8x32xf32, #tpu.memory_space<vmem>>, vector<2x8x8xf32>
    tpu.vector_store %arg10[%c0_41, %c0_42, %c16], %78 {strides = array<i32>} : memref<2x8x32xf32, #tpu.memory_space<vmem>>, vector<2x8x8xf32>,
    %80 = vector.extract_strided_slice %23 {offsets = [0, 0, 24], sizes = [2, 8, 8], strides = [1, 1, 1]} : vector<2x8x32xf32> to vector<2x8x8xf32>
    %81 = vector.extract_strided_slice %24 {offsets = [0, 0, 24], sizes = [2, 16, 8], strides = [1, 1, 1]} : vector<2x16x32xf32> to vector<2x16x8xf32>
    "tpu.trace_start"() <{level = 10 : i32, message = "btd,bsd->bts"}> : () -> ()
    %cst_43 = arith.constant dense<0.000000e+00> : vector<2x8x16xf32>
    %82 = tpu.matmul %80, %81, %cst_43 {dimension_numbers = #tpu.dot_dimension_numbers<[2], [2], [1], [1], [0, 0, 0, 1, 1, 1], [0], [0]>} : vector<2x8x8xf32>, vector<2x16x8xf32>, vector<2x8x16xf32> -> vector<2x8x16xf32>
    "tpu.trace_stop"() : () -> ()
    %cst_44 = arith.constant dense<0xFF800000> : vector<2x8xf32>
    %83 = vector.multi_reduction <maximumf>, %82, %cst_44 [2] : vector<2x8x16xf32> to vector<2x8xf32>
    %84 = vector.shape_cast %83 : vector<2x8xf32> to vector<2x8x1xf32>
    %85 = vector.broadcast %84 : vector<2x8x1xf32> to vector<2x8x16xf32>
    %86 = arith.subf %82, %85 : vector<2x8x16xf32>
    %87 = math.exp %86 : vector<2x8x16xf32>
    %cst_45 = arith.constant dense<0.000000e+00> : vector<2x8xf32>
    %88 = vector.multi_reduction <add>, %87, %cst_45 [2] : vector<2x8x16xf32> to vector<2x8xf32>
    %89 = vector.shape_cast %88 : vector<2x8xf32> to vector<2x8x1xf32>
    %90 = tpu.reciprocal %89 {approx = true} : vector<2x8x1xf32> -> vector<2x8x1xf32>
    %91 = vector.broadcast %90 : vector<2x8x1xf32> to vector<2x8x16xf32>
    %92 = arith.mulf %87, %91 : vector<2x8x16xf32>
    %93 = vector.shape_cast %92 : vector<2x8x16xf32> to vector<2x1x8x16xf32>
    %c0_46 = arith.constant 0 : index
    %c3 = arith.constant 3 : index
    %c0_47 = arith.constant 0 : index
    %c0_48 = arith.constant 0 : index
    %94 = vector.load %arg9[%c0_46, %c3, %c0_47, %c0_48] : memref<2x4x8x16xf32, #tpu.memory_space<vmem>>, vector<2x1x8x16xf32>
    tpu.vector_store %arg9[%c0_46, %c3, %c0_47, %c0_48], %93 {strides = array<i32>} : memref<2x4x8x16xf32, #tpu.memory_space<vmem>>, vector<2x1x8x16xf32>,
    %95 = vector.extract_strided_slice %25 {offsets = [0, 0, 24], sizes = [2, 16, 8], strides = [1, 1, 1]} : vector<2x16x32xf32> to vector<2x16x8xf32>
    "tpu.trace_start"() <{level = 10 : i32, message = "bts,bsd->btd"}> : () -> ()
    %cst_49 = arith.constant dense<0.000000e+00> : vector<2x8x8xf32>
    %96 = tpu.matmul %92, %95, %cst_49 {dimension_numbers = #tpu.dot_dimension_numbers<[2], [1], [1], [2], [0, 0, 0, 1, 1, 2], [0], [0]>} : vector<2x8x16xf32>, vector<2x16x8xf32>, vector<2x8x8xf32> -> vector<2x8x8xf32>
    "tpu.trace_stop"() : () -> ()
    %c0_50 = arith.constant 0 : index
    %c0_51 = arith.constant 0 : index
    %c24 = arith.constant 24 : index
    %97 = vector.load %arg10[%c0_50, %c0_51, %c24] : memref<2x8x32xf32, #tpu.memory_space<vmem>>, vector<2x8x8xf32>
    tpu.vector_store %arg10[%c0_50, %c0_51, %c24], %96 {strides = array<i32>} : memref<2x8x32xf32, #tpu.memory_space<vmem>>, vector<2x8x8xf32>,
    %c0_52 = arith.constant 0 : index
    %c0_53 = arith.constant 0 : index
    %c0_54 = arith.constant 0 : index
    %98 = vector.load %arg10[%c0_52, %c0_53, %c0_54] : memref<2x8x32xf32, #tpu.memory_space<vmem>>, vector<2x8x32xf32>
    %99 = vector.shape_cast %98 : vector<2x8x32xf32> to vector<16x32xf32>
    %c0_55 = arith.constant 0 : index
    %c0_56 = arith.constant 0 : index
    %100 = vector.load %arg6[%c0_55, %c0_56] : memref<32x32xf32, #tpu.memory_space<vmem>>, vector<32x32xf32>
    %cst_57 = arith.constant dense<0.000000e+00> : vector<16x32xf32>
    %101 = tpu.matmul %99, %100, %cst_57 {dimension_numbers = #tpu.dot_dimension_numbers<[1], [0], [0], [1], [0, 0, 1, 1], [], []>} : vector<16x32xf32>, vector<32x32xf32>, vector<16x32xf32> -> vector<16x32xf32>
    %c0_58 = arith.constant 0 : index
    %c0_59 = arith.constant 0 : index
    %102 = vector.load %arg7[%c0_58, %c0_59] : memref<1x32xf32, #tpu.memory_space<vmem>>, vector<1x32xf32>
    %103 = vector.broadcast %102 : vector<1x32xf32> to vector<16x32xf32>
    %104 = arith.addf %101, %103 : vector<16x32xf32>
    %105 = vector.shape_cast %104 : vector<16x32xf32> to vector<2x8x32xf32>
    %c0_60 = arith.constant 0 : index
    %c0_61 = arith.constant 0 : index
    %c0_62 = arith.constant 0 : index
    %106 = vector.load %arg8[%c0_60, %c0_61, %c0_62] : memref<2x8x32xf32, #tpu.memory_space<vmem>>, vector<2x8x32xf32>
    tpu.vector_store %arg8[%c0_60, %c0_61, %c0_62], %105 {strides = array<i32>} : memref<2x8x32xf32, #tpu.memory_space<vmem>>, vector<2x8x32xf32>,
    return
  }
  func.func @transform_0(%arg0: i32) -> (i32, i32, i32) {
    %c0_i32 = arith.constant 0 : i32
    %c0_i32_0 = arith.constant 0 : i32
    %c0_i32_1 = arith.constant 0 : i32
    %c0_i32_2 = arith.constant 0 : i32
    return %c0_i32, %c0_i32_0, %c0_i32_1 : i32, i32, i32
  }
  func.func @transform_1(%arg0: i32) -> (i32, i32, i32) {
    %c0_i32 = arith.constant 0 : i32
    %c0_i32_0 = arith.constant 0 : i32
    %c0_i32_1 = arith.constant 0 : i32
    %c0_i32_2 = arith.constant 0 : i32
    return %c0_i32, %c0_i32_0, %c0_i32_1 : i32, i32, i32
  }
  func.func @transform_2(%arg0: i32) -> (i32, i32, i32) {
    %c0_i32 = arith.constant 0 : i32
    %c0_i32_0 = arith.constant 0 : i32
    %c0_i32_1 = arith.constant 0 : i32
    %c0_i32_2 = arith.constant 0 : i32
    return %c0_i32, %c0_i32_0, %c0_i32_1 : i32, i32, i32
  }
  func.func @transform_3(%arg0: i32) -> (i32, i32) {
    %c0_i32 = arith.constant 0 : i32
    %c0_i32_0 = arith.constant 0 : i32
    %c0_i32_1 = arith.constant 0 : i32
    return %c0_i32, %c0_i32_0 : i32, i32
  }
  func.func @transform_4(%arg0: i32) -> (i32, i32) {
    %c0_i32 = arith.constant 0 : i32
    %c0_i32_0 = arith.constant 0 : i32
    %c0_i32_1 = arith.constant 0 : i32
    return %c0_i32, %c0_i32_0 : i32, i32
  }
  func.func @transform_5(%arg0: i32) -> (i32, i32) {
    %c0_i32 = arith.constant 0 : i32
    %c0_i32_0 = arith.constant 0 : i32
    %c0_i32_1 = arith.constant 0 : i32
    return %c0_i32, %c0_i32_0 : i32, i32
  }
  func.func @transform_6(%arg0: i32) -> (i32, i32) {
    %c0_i32 = arith.constant 0 : i32
    %c0_i32_0 = arith.constant 0 : i32
    %c0_i32_1 = arith.constant 0 : i32
    return %c0_i32, %c0_i32_0 : i32, i32
  }
  func.func @transform_7(%arg0: i32) -> (i32, i32, i32) {
    %c0_i32 = arith.constant 0 : i32
    %c0_i32_0 = arith.constant 0 : i32
    %c0_i32_1 = arith.constant 0 : i32
    %c0_i32_2 = arith.constant 0 : i32
    return %c0_i32, %c0_i32_0, %c0_i32_1 : i32, i32, i32
  }
  func.func @transform_8(%arg0: i32) -> (i32, i32, i32, i32) {
    %c0_i32 = arith.constant 0 : i32
    %c0_i32_0 = arith.constant 0 : i32
    %c0_i32_1 = arith.constant 0 : i32
    %c0_i32_2 = arith.constant 0 : i32
    %c0_i32_3 = arith.constant 0 : i32
    return %c0_i32, %c0_i32_0, %c0_i32_1, %c0_i32_2 : i32, i32, i32, i32
  }
}

</mosaic_0001>

<llo_original>
// kernel: multihead_attention.1
$region0: #{multihead_attention.1}
  #allocation0 [shape = 'u32[]', space=smem, size = 0x4, offset = 0x4, fixed_abs, tag = 'smem constant byte address 0x4 - core index']
  #allocation1 [shape = 'u32[144,128]{1,0:T(1,128)}', space=vmem, size = 0x12000, scoped, tag = 'internal scratch']
  #allocation2 [shape = 'f32[2,8,32]{2,1,0:T(8,128)}', space=vmem, size = 0x2000, scoped, tag = 'scratch operand']
  %s0 = inlined_call_operand.vmem [shape: f32[2,8,32], index: 0, kind: input, shape index: {}]
  %s1 = inlined_call_operand.vmem [shape: f32[2,16,32], index: 1, kind: input, shape index: {}]
  %s2 = inlined_call_operand.vmem [shape: f32[2,16,32], index: 2, kind: input, shape index: {}]
  %s3 = inlined_call_operand.vmem [shape: f32[32,96], index: 3, kind: input, shape index: {}]
  %s4 = inlined_call_operand.vmem [shape: f32[1,96], index: 4, kind: input, shape index: {}]
  %s5 = inlined_call_operand.vmem [shape: f32[32,32], index: 5, kind: input, shape index: {}]
  %s6 = inlined_call_operand.vmem [shape: f32[1,32], index: 6, kind: input, shape index: {}]
  %s7 = inlined_call_operand.vmem [shape: f32[2,8,32], index: 7, kind: output, shape index: {0}]
  %s8 = inlined_call_operand.hbm [shape: f32[2,4,8,16], index: 8, kind: output, shape index: {1}]
  %9 = xla_tuple %s7, %s8
  %s10 = sld [smem:[#allocation0]]
  $region46: #{multihead_attention.1} parent=0
    _
  %s12 = ssub.s32 1, %s10
  %s13 = scalar_select 0, %s12, %s10
  $region1: #{multihead_attention.1} parent=0
    #allocation3 [shape = 'u8[32768]{0}', space=vmem, size = 0x8000, scoped, tag = 'output window, operand 1, single buffered']
    #allocation4 [shape = 's32[1]{0}', space=sflag, size = 0x4, scoped, tag = 'scoped memory for multihead_attention.1']
    %14 = vsyncpa [#allocation4], 0
    // Predicated region
    $region2: #{multihead_attention.1} parent=1 // pred_check
      _
    $region3: #{multihead_attention.1} parent=1 // pred_check_branch
      %16 = sbr.rel (0) target = $region5
    $region4: #{multihead_attention.1} parent=1 // pred_region
      _
    $region5: #{multihead_attention.1} parent=1 // pred_fallthru
      _
    // Predicated region
    $region6: #{multihead_attention.1} parent=1 // pred_check
      _
    $region7: #{multihead_attention.1} parent=1 // pred_check_branch
      %18 = sbr.rel (0) target = $region9
    $region8: #{multihead_attention.1} parent=1 // pred_region
      _
    $region9: #{multihead_attention.1} parent=1 // pred_fallthru
      _
    // Predicated region
    $region10: #{multihead_attention.1} parent=1 // pred_check
      _
    $region11: #{multihead_attention.1} parent=1 // pred_check_branch
      %20 = sbr.rel (0) target = $region13
    $region12: #{multihead_attention.1} parent=1 // pred_region
      _
    $region13: #{multihead_attention.1} parent=1 // pred_fallthru
      _
    // Predicated region
    $region14: #{multihead_attention.1} parent=1 // pred_check
      _
    $region15: #{multihead_attention.1} parent=1 // pred_check_branch
      %22 = sbr.rel (0) target = $region17
    $region16: #{multihead_attention.1} parent=1 // pred_region
      _
    $region17: #{multihead_attention.1} parent=1 // pred_fallthru
      _
    // Predicated region
    $region18: #{multihead_attention.1} parent=1 // pred_check
      _
    $region19: #{multihead_attention.1} parent=1 // pred_check_branch
      %24 = sbr.rel (0) target = $region21
    $region20: #{multihead_attention.1} parent=1 // pred_region
      _
    $region21: #{multihead_attention.1} parent=1 // pred_fallthru
      _
    // Predicated region
    $region22: #{multihead_attention.1} parent=1 // pred_check
      _
    $region23: #{multihead_attention.1} parent=1 // pred_check_branch
      %26 = sbr.rel (0) target = $region25
    $region24: #{multihead_attention.1} parent=1 // pred_region
      _
    $region25: #{multihead_attention.1} parent=1 // pred_fallthru
      _
    // Predicated region
    $region26: #{multihead_attention.1} parent=1 // pred_check
      _
    $region27: #{multihead_attention.1} parent=1 // pred_check_branch
      %28 = sbr.rel (0) target = $region29
    $region28: #{multihead_attention.1} parent=1 // pred_region
      _
    $region29: #{multihead_attention.1} parent=1 // pred_fallthru
      _
    %v29 = vld [vmem:[%s3] sm:$0xff]
    %v30 = vld [vmem:[%s3 + $0x8] sm:$0xff]
    %v31 = vld [vmem:[%s3 + $0x10] sm:$0xff]
    %v32 = vld [vmem:[%s3 + $0x18] sm:$0xff]
    %v33 = vld [vmem:[%s4] sm:$0x1]
    %v34 = vld [vmem:[%s0] sm:$0xff]
    %v35 = vld [vmem:[%s0 + $0x8] sm:$0xff]
    %v37 = vlaneseq
    %v38 = vshrl.u32 %v37, 7
    %v39 = vsub.s32 0, %v38
    %v40 = vrot.slane %v33, %v39
    %vm42 = vcmask 261120
    %v44 = vsel %vm42, %v34, 0
    %v47 = vsel %vm42, %v35, 0
    %49 = vmatprep.subr.mxu0 0.0
    %50 = vmatpush1.msra.mxu0 %v29
    %51 = vmatprep.subr.mxu0 0.0
    %52 = vmatpush1.msra.mxu0 %v30
    %53 = vmatprep.subr.mxu0 0.0
    %54 = vmatpush1.msra.mxu0 %v31
    %55 = vmatprep.subr.mxu0 0.0
    %56 = vmatpush1.msra.mxu0 %v32
    %57 = vmatprep.subr.mxu0 0.0
    %58 = vmatpush1.msra.mxu0 0.0
    %59 = vmatprep.subr.mxu0 0.0
    %60 = vmatpush1.msra.mxu0 0.0
    %61 = vmatprep.subr.mxu0 0.0
    %62 = vmatpush1.msra.mxu0 0.0
    %63 = vmatprep.subr.mxu0 0.0
    %64 = vmatpush1.msra.mxu0 0.0
    %65 = vmatprep.subr.mxu0 0.0
    %66 = vmatpush1.msra.mxu0 0.0
    %67 = vmatprep.subr.mxu0 0.0
    %68 = vmatpush1.msra.mxu0 0.0
    %69 = vmatprep.subr.mxu0 0.0
    %70 = vmatpush1.msra.mxu0 0.0
    %71 = vmatprep.subr.mxu0 0.0
    %72 = vmatpush1.msra.mxu0 0.0
    %73 = vmatprep.subr.mxu0 0.0
    %74 = vmatpush1.msra.mxu0 0.0
    %75 = vmatprep.subr.mxu0 0.0
    %76 = vmatpush1.msra.mxu0 0.0
    %77 = vmatprep.subr.mxu0 0.0
    %78 = vmatpush1.msra.mxu0 0.0
    %79 = vmatprep.subr.mxu0 0.0
    %80 = vmatpush1.msra.mxu0 0.0
    %81 = vmatprep.subr.mxu0 0.0
    %82 = vmatpush1.msra.mxu0 0.0
    %83 = vmatprep.subr.mxu0 0.0
    %84 = vmatpush1.msra.mxu0 0.0
    %85 = vmatprep.subr.mxu0 0.0
    %86 = vmatpush1.msra.mxu0 0.0
    %87 = vmatprep.subr.mxu0 0.0
    %88 = vmatpush1.msra.mxu0 0.0
    %89 = vmatprep.subr.mxu0 0.0
    %90 = vmatpush1.msra.mxu0 0.0
    %91 = vmatprep.subr.mxu0 0.0
    %92 = vmatpush1.msra.mxu0 0.0
    %93 = vmatprep.subr.mxu0 0.0
    %94 = vmatpush1.msra.mxu0 0.0
    %95 = vmatprep.subr.mxu0 0.0
    %96 = vmatpush1.msra.mxu0 0.0
    %97 = vmatprep.subr.mxu0 0.0
    %98 = vmatpush1.msra.mxu0 0.0
    %99 = vmatprep.subr.mxu0 0.0
    %100 = vmatpush1.msra.mxu0 0.0
    %101 = vmatprep.subr.mxu0 0.0
    %102 = vmatpush1.msra.mxu0 0.0
    %103 = vmatprep.subr.mxu0 0.0
    %104 = vmatpush1.msra.mxu0 0.0
    %105 = vmatprep.subr.mxu0 0.0
    %106 = vmatpush1.msra.mxu0 0.0
    %107 = vmatprep.subr.mxu0 0.0
    %108 = vmatpush1.msra.mxu0 0.0
    %109 = vmatprep.subr.mxu0 0.0
    %110 = vmatpush1.msra.mxu0 0.0
    %111 = vmatprep.subr.mxu0 0.0
    %112 = vmatpush1.msra.mxu0 0.0
    %113 = vmatprep.mubr.f32.mxu0 0.0
    %114 = vmatmul.mubr.f32.gmra.mrb[0].mxu0 %v44
    %v115 = vpop.f32.mrb[0].mxu0
    %v116 = vadd.f32 %v40, %v115
    %v117 = vpop.f32.mrb[0].mxu0
    %118 = vmatprep.mubr.f32.mxu0 0.0
    %119 = vmatmul.mubr.f32.gmra.mrb[0].mxu0 %v47
    %v120 = vpop.f32.mrb[0].mxu0
    %v121 = vadd.f32 %v40, %v120
    %v122 = vpop.f32.mrb[0].mxu0
    %123 = vdwg.mxu0
    %v124 = vld [vmem:[%s1] sm:$0xff]
    %v125 = vld [vmem:[%s1 + $0x8] sm:$0xff]
    %v126 = vld [vmem:[%s1 + $0x10] sm:$0xff]
    %v127 = vld [vmem:[%s1 + $0x18] sm:$0xff]
    %132 = vrot.lane.b32.xlu0 %v29, 96
    %v133 = vpop.permute.xlu0 %132
    %134 = vrot.lane.b32.xlu0 %v30, 96
    %v135 = vpop.permute.xlu0 %134
    %136 = vrot.lane.b32.xlu0 %v31, 96
    %v137 = vpop.permute.xlu0 %136
    %138 = vrot.lane.b32.xlu0 %v32, 96
    %v139 = vpop.permute.xlu0 %138
    %144 = vrot.lane.b32.xlu0 %v40, 96
    %v145 = vpop.permute.xlu0 %144
    %v148 = vsel %vm42, %v124, 0
    %v151 = vsel %vm42, %v125, 0
    %v154 = vsel %vm42, %v126, 0
    %v157 = vsel %vm42, %v127, 0
    %159 = vmatprep.subr.mxu0 0.0
    %160 = vmatpush1.msra.mxu0 %v133
    %161 = vmatprep.subr.mxu0 0.0
    %162 = vmatpush1.msra.mxu0 %v135
    %163 = vmatprep.subr.mxu0 0.0
    %164 = vmatpush1.msra.mxu0 %v137
    %165 = vmatprep.subr.mxu0 0.0
    %166 = vmatpush1.msra.mxu0 %v139
    %167 = vmatprep.subr.mxu0 0.0
    %168 = vmatpush1.msra.mxu0 0.0
    %169 = vmatprep.subr.mxu0 0.0
    %170 = vmatpush1.msra.mxu0 0.0
    %171 = vmatprep.subr.mxu0 0.0
    %172 = vmatpush1.msra.mxu0 0.0
    %173 = vmatprep.subr.mxu0 0.0
    %174 = vmatpush1.msra.mxu0 0.0
    %175 = vmatprep.subr.mxu0 0.0
    %176 = vmatpush1.msra.mxu0 0.0
    %177 = vmatprep.subr.mxu0 0.0
    %178 = vmatpush1.msra.mxu0 0.0
    %179 = vmatprep.subr.mxu0 0.0
    %180 = vmatpush1.msra.mxu0 0.0
    %181 = vmatprep.subr.mxu0 0.0
    %182 = vmatpush1.msra.mxu0 0.0
    %183 = vmatprep.subr.mxu0 0.0
    %184 = vmatpush1.msra.mxu0 0.0
    %185 = vmatprep.subr.mxu0 0.0
    %186 = vmatpush1.msra.mxu0 0.0
    %187 = vmatprep.subr.mxu0 0.0
    %188 = vmatpush1.msra.mxu0 0.0
    %189 = vmatprep.subr.mxu0 0.0
    %190 = vmatpush1.msra.mxu0 0.0
    %191 = vmatprep.subr.mxu0 0.0
    %192 = vmatpush1.msra.mxu0 0.0
    %193 = vmatprep.subr.mxu0 0.0
    %194 = vmatpush1.msra.mxu0 0.0
    %195 = vmatprep.subr.mxu0 0.0
    %196 = vmatpush1.msra.mxu0 0.0
    %197 = vmatprep.subr.mxu0 0.0
    %198 = vmatpush1.msra.mxu0 0.0
    %199 = vmatprep.subr.mxu0 0.0
    %200 = vmatpush1.msra.mxu0 0.0
    %201 = vmatprep.subr.mxu0 0.0
    %202 = vmatpush1.msra.mxu0 0.0
    %203 = vmatprep.subr.mxu0 0.0
    %204 = vmatpush1.msra.mxu0 0.0
    %205 = vmatprep.subr.mxu0 0.0
    %206 = vmatpush1.msra.mxu0 0.0
    %207 = vmatprep.subr.mxu0 0.0
    %208 = vmatpush1.msra.mxu0 0.0
    %209 = vmatprep.subr.mxu0 0.0
    %210 = vmatpush1.msra.mxu0 0.0
    %211 = vmatprep.subr.mxu0 0.0
    %212 = vmatpush1.msra.mxu0 0.0
    %213 = vmatprep.subr.mxu0 0.0
    %214 = vmatpush1.msra.mxu0 0.0
    %215 = vmatprep.subr.mxu0 0.0
    %216 = vmatpush1.msra.mxu0 0.0
    %217 = vmatprep.subr.mxu0 0.0
    %218 = vmatpush1.msra.mxu0 0.0
    %219 = vmatprep.subr.mxu0 0.0
    %220 = vmatpush1.msra.mxu0 0.0
    %221 = vmatprep.subr.mxu0 0.0
    %222 = vmatpush1.msra.mxu0 0.0
    %223 = vmatprep.mubr.f32.mxu0 0.0
    %224 = vmatmul.mubr.f32.gmra.mrb[0].mxu0 %v148
    %v225 = vpop.f32.mrb[0].mxu0
    %v226 = vadd.f32 %v145, %v225
    %v227 = vpop.f32.mrb[0].mxu0
    %228 = vmatprep.mubr.f32.mxu0 0.0
    %229 = vmatmul.mubr.f32.gmra.mrb[0].mxu0 %v151
    %v230 = vpop.f32.mrb[0].mxu0
    %v231 = vadd.f32 %v145, %v230
    %v232 = vpop.f32.mrb[0].mxu0
    %233 = vmatprep.mubr.f32.mxu0 0.0
    %234 = vmatmul.mubr.f32.gmra.mrb[0].mxu0 %v154
    %v235 = vpop.f32.mrb[0].mxu0
    %v236 = vadd.f32 %v145, %v235
    %v237 = vpop.f32.mrb[0].mxu0
    %238 = vmatprep.mubr.f32.mxu0 0.0
    %239 = vmatmul.mubr.f32.gmra.mrb[0].mxu0 %v157
    %v240 = vpop.f32.mrb[0].mxu0
    %v241 = vadd.f32 %v145, %v240
    %v242 = vpop.f32.mrb[0].mxu0
    %243 = vdwg.mxu0
    %v244 = vld [vmem:[%s2] sm:$0xff]
    %v245 = vld [vmem:[%s2 + $0x8] sm:$0xff]
    %v246 = vld [vmem:[%s2 + $0x10] sm:$0xff]
    %v247 = vld [vmem:[%s2 + $0x18] sm:$0xff]
    %248 = vrot.lane.b32.xlu0 %v29, 64
    %v249 = vpop.permute.xlu0 %248
    %250 = vrot.lane.b32.xlu0 %v30, 64
    %v251 = vpop.permute.xlu0 %250
    %252 = vrot.lane.b32.xlu0 %v31, 64
    %v253 = vpop.permute.xlu0 %252
    %254 = vrot.lane.b32.xlu0 %v32, 64
    %v255 = vpop.permute.xlu0 %254
    %260 = vrot.lane.b32.xlu0 %v40, 64
    %v261 = vpop.permute.xlu0 %260
    %v264 = vsel %vm42, %v244, 0
    %v267 = vsel %vm42, %v245, 0
    %v270 = vsel %vm42, %v246, 0
    %v273 = vsel %vm42, %v247, 0
    %275 = vmatprep.subr.mxu0 0.0
    %276 = vmatpush1.msra.mxu0 %v249
    %277 = vmatprep.subr.mxu0 0.0
    %278 = vmatpush1.msra.mxu0 %v251
    %279 = vmatprep.subr.mxu0 0.0
    %280 = vmatpush1.msra.mxu0 %v253
    %281 = vmatprep.subr.mxu0 0.0
    %282 = vmatpush1.msra.mxu0 %v255
    %283 = vmatprep.subr.mxu0 0.0
    %284 = vmatpush1.msra.mxu0 0.0
    %285 = vmatprep.subr.mxu0 0.0
    %286 = vmatpush1.msra.mxu0 0.0
    %287 = vmatprep.subr.mxu0 0.0
    %288 = vmatpush1.msra.mxu0 0.0
    %289 = vmatprep.subr.mxu0 0.0
    %290 = vmatpush1.msra.mxu0 0.0
    %291 = vmatprep.subr.mxu0 0.0
    %292 = vmatpush1.msra.mxu0 0.0
    %293 = vmatprep.subr.mxu0 0.0
    %294 = vmatpush1.msra.mxu0 0.0
    %295 = vmatprep.subr.mxu0 0.0
    %296 = vmatpush1.msra.mxu0 0.0
    %297 = vmatprep.subr.mxu0 0.0
    %298 = vmatpush1.msra.mxu0 0.0
    %299 = vmatprep.subr.mxu0 0.0
    %300 = vmatpush1.msra.mxu0 0.0
    %301 = vmatprep.subr.mxu0 0.0
    %302 = vmatpush1.msra.mxu0 0.0
    %303 = vmatprep.subr.mxu0 0.0
    %304 = vmatpush1.msra.mxu0 0.0
    %305 = vmatprep.subr.mxu0 0.0
    %306 = vmatpush1.msra.mxu0 0.0
    %307 = vmatprep.subr.mxu0 0.0
    %308 = vmatpush1.msra.mxu0 0.0
    %309 = vmatprep.subr.mxu0 0.0
    %310 = vmatpush1.msra.mxu0 0.0
    %311 = vmatprep.subr.mxu0 0.0
    %312 = vmatpush1.msra.mxu0 0.0
    %313 = vmatprep.subr.mxu0 0.0
    %314 = vmatpush1.msra.mxu0 0.0
    %315 = vmatprep.subr.mxu0 0.0
    %316 = vmatpush1.msra.mxu0 0.0
    %317 = vmatprep.subr.mxu0 0.0
    %318 = vmatpush1.msra.mxu0 0.0
    %319 = vmatprep.subr.mxu0 0.0
    %320 = vmatpush1.msra.mxu0 0.0
    %321 = vmatprep.subr.mxu0 0.0
    %322 = vmatpush1.msra.mxu0 0.0
    %323 = vmatprep.subr.mxu0 0.0
    %324 = vmatpush1.msra.mxu0 0.0
    %325 = vmatprep.subr.mxu0 0.0
    %326 = vmatpush1.msra.mxu0 0.0
    %327 = vmatprep.subr.mxu0 0.0
    %328 = vmatpush1.msra.mxu0 0.0
    %329 = vmatprep.subr.mxu0 0.0
    %330 = vmatpush1.msra.mxu0 0.0
    %331 = vmatprep.subr.mxu0 0.0
    %332 = vmatpush1.msra.mxu0 0.0
    %333 = vmatprep.subr.mxu0 0.0
    %334 = vmatpush1.msra.mxu0 0.0
    %335 = vmatprep.subr.mxu0 0.0
    %336 = vmatpush1.msra.mxu0 0.0
    %337 = vmatprep.subr.mxu0 0.0
    %338 = vmatpush1.msra.mxu0 0.0
    %339 = vmatprep.mubr.f32.mxu0 0.0
    %340 = vmatmul.mubr.f32.gmra.mrb[0].mxu0 %v264
    %v341 = vpop.f32.mrb[0].mxu0
    %v342 = vadd.f32 %v261, %v341
    %v343 = vpop.f32.mrb[0].mxu0
    %344 = vmatprep.mubr.f32.mxu0 0.0
    %345 = vmatmul.mubr.f32.gmra.mrb[0].mxu0 %v267
    %v346 = vpop.f32.mrb[0].mxu0
    %v347 = vadd.f32 %v261, %v346
    %v348 = vpop.f32.mrb[0].mxu0
    %349 = vmatprep.mubr.f32.mxu0 0.0
    %350 = vmatmul.mubr.f32.gmra.mrb[0].mxu0 %v270
    %v351 = vpop.f32.mrb[0].mxu0
    %v352 = vadd.f32 %v261, %v351
    %v353 = vpop.f32.mrb[0].mxu0
    %354 = vmatprep.mubr.f32.mxu0 0.0
    %355 = vmatmul.mubr.f32.gmra.mrb[0].mxu0 %v273
    %v356 = vpop.f32.mrb[0].mxu0
    %v357 = vadd.f32 %v261, %v356
    %v358 = vpop.f32.mrb[0].mxu0
    %359 = vdwg.mxu0
    %vm360 = vcmask 64512
    %v362 = vsel %vm360, %v116, 0
    %v365 = vsel %vm360, %v226, 0
    %v368 = vsel %vm360, %v231, 0
    %370 = vmatprep.subr.mxu0 0.0
    %371 = vmatpush1.xpose.msra.mxu0 %v365
    %372 = vmatprep.subr.mxu0 0.0
    %373 = vmatpush1.xpose.msra.mxu0 %v368
    %374 = vmatprep.subr.mxu0 0.0
    %375 = vmatpush1.xpose.msra.mxu0 0.0
    %376 = vmatprep.subr.mxu0 0.0
    %377 = vmatpush1.xpose.msra.mxu0 0.0
    %378 = vmatprep.subr.mxu0 0.0
    %379 = vmatpush1.xpose.msra.mxu0 0.0
    %380 = vmatprep.subr.mxu0 0.0
    %381 = vmatpush1.xpose.msra.mxu0 0.0
    %382 = vmatprep.subr.mxu0 0.0
    %383 = vmatpush1.xpose.msra.mxu0 0.0
    %384 = vmatprep.subr.mxu0 0.0
    %385 = vmatpush1.xpose.msra.mxu0 0.0
    %386 = vmatprep.subr.mxu0 0.0
    %387 = vmatpush1.xpose.msra.mxu0 0.0
    %388 = vmatprep.subr.mxu0 0.0
    %389 = vmatpush1.xpose.msra.mxu0 0.0
    %390 = vmatprep.subr.mxu0 0.0
    %391 = vmatpush1.xpose.msra.mxu0 0.0
    %392 = vmatprep.subr.mxu0 0.0
    %393 = vmatpush1.xpose.msra.mxu0 0.0
    %394 = vmatprep.subr.mxu0 0.0
    %395 = vmatpush1.xpose.msra.mxu0 0.0
    %396 = vmatprep.subr.mxu0 0.0
    %397 = vmatpush1.xpose.msra.mxu0 0.0
    %398 = vmatprep.subr.mxu0 0.0
    %399 = vmatpush1.xpose.msra.mxu0 0.0
    %400 = vmatprep.subr.mxu0 0.0
    %401 = vmatpush1.xpose.msra.mxu0 0.0
    %402 = vmatprep.subr.mxu0 0.0
    %403 = vmatpush1.xpose.msra.mxu0 0.0
    %404 = vmatprep.subr.mxu0 0.0
    %405 = vmatpush1.xpose.msra.mxu0 0.0
    %406 = vmatprep.subr.mxu0 0.0
    %407 = vmatpush1.xpose.msra.mxu0 0.0
    %408 = vmatprep.subr.mxu0 0.0
    %409 = vmatpush1.xpose.msra.mxu0 0.0
    %410 = vmatprep.subr.mxu0 0.0
    %411 = vmatpush1.xpose.msra.mxu0 0.0
    %412 = vmatprep.subr.mxu0 0.0
    %413 = vmatpush1.xpose.msra.mxu0 0.0
    %414 = vmatprep.subr.mxu0 0.0
    %415 = vmatpush1.xpose.msra.mxu0 0.0
    %416 = vmatprep.subr.mxu0 0.0
    %417 = vmatpush1.xpose.msra.mxu0 0.0
    %418 = vmatprep.subr.mxu0 0.0
    %419 = vmatpush1.xpose.msra.mxu0 0.0
    %420 = vmatprep.subr.mxu0 0.0
    %421 = vmatpush1.xpose.msra.mxu0 0.0
    %422 = vmatprep.subr.mxu0 0.0
    %423 = vmatpush1.xpose.msra.mxu0 0.0
    %424 = vmatprep.subr.mxu0 0.0
    %425 = vmatpush1.xpose.msra.mxu0 0.0
    %426 = vmatprep.subr.mxu0 0.0
    %427 = vmatpush1.xpose.msra.mxu0 0.0
    %428 = vmatprep.subr.mxu0 0.0
    %429 = vmatpush1.xpose.msra.mxu0 0.0
    %430 = vmatprep.subr.mxu0 0.0
    %431 = vmatpush1.xpose.msra.mxu0 0.0
    %432 = vmatprep.subr.mxu0 0.0
    %433 = vmatpush1.xpose.msra.mxu0 0.0
    %434 = vmatprep.mubr.f32.mxu0 0.0
    %435 = vmatmul.mubr.f32.gmra.mrb[0].mxu0 %v362
    %v436 = vpop.f32.mrb[0].mxu0
    %v437 = vadd.f32 0.0, %v436
    %v438 = vpop.f32.mrb[0].mxu0
    %439 = vdwg.mxu0
    %v441 = vsel %vm360, %v121, 0
    %v444 = vsel %vm360, %v236, 0
    %v447 = vsel %vm360, %v241, 0
    %449 = vmatprep.subr.mxu0 0.0
    %450 = vmatpush1.xpose.msra.mxu0 %v444
    %451 = vmatprep.subr.mxu0 0.0
    %452 = vmatpush1.xpose.msra.mxu0 %v447
    %453 = vmatprep.subr.mxu0 0.0
    %454 = vmatpush1.xpose.msra.mxu0 0.0
    %455 = vmatprep.subr.mxu0 0.0
    %456 = vmatpush1.xpose.msra.mxu0 0.0
    %457 = vmatprep.subr.mxu0 0.0
    %458 = vmatpush1.xpose.msra.mxu0 0.0
    %459 = vmatprep.subr.mxu0 0.0
    %460 = vmatpush1.xpose.msra.mxu0 0.0
    %461 = vmatprep.subr.mxu0 0.0
    %462 = vmatpush1.xpose.msra.mxu0 0.0
    %463 = vmatprep.subr.mxu0 0.0
    %464 = vmatpush1.xpose.msra.mxu0 0.0
    %465 = vmatprep.subr.mxu0 0.0
    %466 = vmatpush1.xpose.msra.mxu0 0.0
    %467 = vmatprep.subr.mxu0 0.0
    %468 = vmatpush1.xpose.msra.mxu0 0.0
    %469 = vmatprep.subr.mxu0 0.0
    %470 = vmatpush1.xpose.msra.mxu0 0.0
    %471 = vmatprep.subr.mxu0 0.0
    %472 = vmatpush1.xpose.msra.mxu0 0.0
    %473 = vmatprep.subr.mxu0 0.0
    %474 = vmatpush1.xpose.msra.mxu0 0.0
    %475 = vmatprep.subr.mxu0 0.0
    %476 = vmatpush1.xpose.msra.mxu0 0.0
    %477 = vmatprep.subr.mxu0 0.0
    %478 = vmatpush1.xpose.msra.mxu0 0.0
    %479 = vmatprep.subr.mxu0 0.0
    %480 = vmatpush1.xpose.msra.mxu0 0.0
    %481 = vmatprep.subr.mxu0 0.0
    %482 = vmatpush1.xpose.msra.mxu0 0.0
    %483 = vmatprep.subr.mxu0 0.0
    %484 = vmatpush1.xpose.msra.mxu0 0.0
    %485 = vmatprep.subr.mxu0 0.0
    %486 = vmatpush1.xpose.msra.mxu0 0.0
    %487 = vmatprep.subr.mxu0 0.0
    %488 = vmatpush1.xpose.msra.mxu0 0.0
    %489 = vmatprep.subr.mxu0 0.0
    %490 = vmatpush1.xpose.msra.mxu0 0.0
    %491 = vmatprep.subr.mxu0 0.0
    %492 = vmatpush1.xpose.msra.mxu0 0.0
    %493 = vmatprep.subr.mxu0 0.0
    %494 = vmatpush1.xpose.msra.mxu0 0.0
    %495 = vmatprep.subr.mxu0 0.0
    %496 = vmatpush1.xpose.msra.mxu0 0.0
    %497 = vmatprep.subr.mxu0 0.0
    %498 = vmatpush1.xpose.msra.mxu0 0.0
    %499 = vmatprep.subr.mxu0 0.0
    %500 = vmatpush1.xpose.msra.mxu0 0.0
    %501 = vmatprep.subr.mxu0 0.0
    %502 = vmatpush1.xpose.msra.mxu0 0.0
    %503 = vmatprep.subr.mxu0 0.0
    %504 = vmatpush1.xpose.msra.mxu0 0.0
    %505 = vmatprep.subr.mxu0 0.0
    %506 = vmatpush1.xpose.msra.mxu0 0.0
    %507 = vmatprep.subr.mxu0 0.0
    %508 = vmatpush1.xpose.msra.mxu0 0.0
    %509 = vmatprep.subr.mxu0 0.0
    %510 = vmatpush1.xpose.msra.mxu0 0.0
    %511 = vmatprep.subr.mxu0 0.0
    %512 = vmatpush1.xpose.msra.mxu0 0.0
    %513 = vmatprep.mubr.f32.mxu0 0.0
    %514 = vmatmul.mubr.f32.gmra.mrb[0].mxu0 %v441
    %v515 = vpop.f32.mrb[0].mxu0
    %v516 = vadd.f32 0.0, %v515
    %v517 = vpop.f32.mrb[0].mxu0
    %518 = vdwg.mxu0
    %vm519 = vcmask 130048
    %v520 = vsel %vm519, %v437, -inf
    %521 = vmax.xlane.f32.xlu0 %v520
    %v522 = vpop.xlane.xlu0 %521
    %v523 = vsel %vm519, %v516, -inf
    %524 = vmax.xlane.f32.xlu0 %v523
    %v525 = vpop.xlane.xlu0 %524
    %v526 = vsub.f32 %v437, %v522
    %v527 = vsub.f32 %v516, %v525
    %v528 = vmul.f32 %v526, 1.442695
    %v529 = vpow.pop %v528
    %v530 = vmul.f32 %v527, 1.442695
    %v531 = vpow.pop %v530
    %v532 = vsel %vm519, %v529, 0.0
    %533 = vadd.xlane.f32.xlu0 %v532
    %v534 = vpop.xlane.xlu0 %533
    %v535 = vsel %vm519, %v531, 0.0
    %536 = vadd.xlane.f32.xlu0 %v535
    %v537 = vpop.xlane.xlu0 %536
    %v538 = vrcp.pop %v534
    %v539 = vrcp.pop %v537
    %v540 = vmul.f32 %v529, %v538
    %v541 = vmul.f32 %v531, %v539
    %542 = vst.msk [vmem:[#allocation3] sm:$0xff] %vm519, %v540
    %543 = vst.msk [vmem:[#allocation3 + $0x20] sm:$0xff] %vm519, %v541
    %v545 = vsel %vm519, %v540, 0
    %547 = vmatprep.subr.mxu0 0.0
    %548 = vmatpush1.msra.mxu0 %v342
    %549 = vmatprep.subr.mxu0 0.0
    %550 = vmatpush1.msra.mxu0 %v347
    %551 = vmatprep.subr.mxu0 0.0
    %552 = vmatpush1.msra.mxu0 0.0
    %553 = vmatprep.subr.mxu0 0.0
    %554 = vmatpush1.msra.mxu0 0.0
    %555 = vmatprep.subr.mxu0 0.0
    %556 = vmatpush1.msra.mxu0 0.0
    %557 = vmatprep.subr.mxu0 0.0
    %558 = vmatpush1.msra.mxu0 0.0
    %559 = vmatprep.subr.mxu0 0.0
    %560 = vmatpush1.msra.mxu0 0.0
    %561 = vmatprep.subr.mxu0 0.0
    %562 = vmatpush1.msra.mxu0 0.0
    %563 = vmatprep.subr.mxu0 0.0
    %564 = vmatpush1.msra.mxu0 0.0
    %565 = vmatprep.subr.mxu0 0.0
    %566 = vmatpush1.msra.mxu0 0.0
    %567 = vmatprep.subr.mxu0 0.0
    %568 = vmatpush1.msra.mxu0 0.0
    %569 = vmatprep.subr.mxu0 0.0
    %570 = vmatpush1.msra.mxu0 0.0
    %571 = vmatprep.subr.mxu0 0.0
    %572 = vmatpush1.msra.mxu0 0.0
    %573 = vmatprep.subr.mxu0 0.0
    %574 = vmatpush1.msra.mxu0 0.0
    %575 = vmatprep.subr.mxu0 0.0
    %576 = vmatpush1.msra.mxu0 0.0
    %577 = vmatprep.subr.mxu0 0.0
    %578 = vmatpush1.msra.mxu0 0.0
    %579 = vmatprep.subr.mxu0 0.0
    %580 = vmatpush1.msra.mxu0 0.0
    %581 = vmatprep.subr.mxu0 0.0
    %582 = vmatpush1.msra.mxu0 0.0
    %583 = vmatprep.subr.mxu0 0.0
    %584 = vmatpush1.msra.mxu0 0.0
    %585 = vmatprep.subr.mxu0 0.0
    %586 = vmatpush1.msra.mxu0 0.0
    %587 = vmatprep.subr.mxu0 0.0
    %588 = vmatpush1.msra.mxu0 0.0
    %589 = vmatprep.subr.mxu0 0.0
    %590 = vmatpush1.msra.mxu0 0.0
    %591 = vmatprep.subr.mxu0 0.0
    %592 = vmatpush1.msra.mxu0 0.0
    %593 = vmatprep.subr.mxu0 0.0
    %594 = vmatpush1.msra.mxu0 0.0
    %595 = vmatprep.subr.mxu0 0.0
    %596 = vmatpush1.msra.mxu0 0.0
    %597 = vmatprep.subr.mxu0 0.0
    %598 = vmatpush1.msra.mxu0 0.0
    %599 = vmatprep.subr.mxu0 0.0
    %600 = vmatpush1.msra.mxu0 0.0
    %601 = vmatprep.subr.mxu0 0.0
    %602 = vmatpush1.msra.mxu0 0.0
    %603 = vmatprep.subr.mxu0 0.0
    %604 = vmatpush1.msra.mxu0 0.0
    %605 = vmatprep.subr.mxu0 0.0
    %606 = vmatpush1.msra.mxu0 0.0
    %607 = vmatprep.subr.mxu0 0.0
    %608 = vmatpush1.msra.mxu0 0.0
    %609 = vmatprep.subr.mxu0 0.0
    %610 = vmatpush1.msra.mxu0 0.0
    %611 = vmatprep.mubr.f32.mxu0 0.0
    %612 = vmatmul.mubr.f32.gmra.mrb[0].mxu0 %v545
    %v613 = vpop.f32.mrb[0].mxu0
    %v614 = vadd.f32 0.0, %v613
    %v615 = vpop.f32.mrb[0].mxu0
    %616 = vdwg.mxu0
    %v618 = vsel %vm519, %v541, 0
    %620 = vmatprep.subr.mxu0 0.0
    %621 = vmatpush1.msra.mxu0 %v352
    %622 = vmatprep.subr.mxu0 0.0
    %623 = vmatpush1.msra.mxu0 %v357
    %624 = vmatprep.subr.mxu0 0.0
    %625 = vmatpush1.msra.mxu0 0.0
    %626 = vmatprep.subr.mxu0 0.0
    %627 = vmatpush1.msra.mxu0 0.0
    %628 = vmatprep.subr.mxu0 0.0
    %629 = vmatpush1.msra.mxu0 0.0
    %630 = vmatprep.subr.mxu0 0.0
    %631 = vmatpush1.msra.mxu0 0.0
    %632 = vmatprep.subr.mxu0 0.0
    %633 = vmatpush1.msra.mxu0 0.0
    %634 = vmatprep.subr.mxu0 0.0
    %635 = vmatpush1.msra.mxu0 0.0
    %636 = vmatprep.subr.mxu0 0.0
    %637 = vmatpush1.msra.mxu0 0.0
    %638 = vmatprep.subr.mxu0 0.0
    %639 = vmatpush1.msra.mxu0 0.0
    %640 = vmatprep.subr.mxu0 0.0
    %641 = vmatpush1.msra.mxu0 0.0
    %642 = vmatprep.subr.mxu0 0.0
    %643 = vmatpush1.msra.mxu0 0.0
    %644 = vmatprep.subr.mxu0 0.0
    %645 = vmatpush1.msra.mxu0 0.0
    %646 = vmatprep.subr.mxu0 0.0
    %647 = vmatpush1.msra.mxu0 0.0
    %648 = vmatprep.subr.mxu0 0.0
    %649 = vmatpush1.msra.mxu0 0.0
    %650 = vmatprep.subr.mxu0 0.0
    %651 = vmatpush1.msra.mxu0 0.0
    %652 = vmatprep.subr.mxu0 0.0
    %653 = vmatpush1.msra.mxu0 0.0
    %654 = vmatprep.subr.mxu0 0.0
    %655 = vmatpush1.msra.mxu0 0.0
    %656 = vmatprep.subr.mxu0 0.0
    %657 = vmatpush1.msra.mxu0 0.0
    %658 = vmatprep.subr.mxu0 0.0
    %659 = vmatpush1.msra.mxu0 0.0
    %660 = vmatprep.subr.mxu0 0.0
    %661 = vmatpush1.msra.mxu0 0.0
    %662 = vmatprep.subr.mxu0 0.0
    %663 = vmatpush1.msra.mxu0 0.0
    %664 = vmatprep.subr.mxu0 0.0
    %665 = vmatpush1.msra.mxu0 0.0
    %666 = vmatprep.subr.mxu0 0.0
    %667 = vmatpush1.msra.mxu0 0.0
    %668 = vmatprep.subr.mxu0 0.0
    %669 = vmatpush1.msra.mxu0 0.0
    %670 = vmatprep.subr.mxu0 0.0
    %671 = vmatpush1.msra.mxu0 0.0
    %672 = vmatprep.subr.mxu0 0.0
    %673 = vmatpush1.msra.mxu0 0.0
    %674 = vmatprep.subr.mxu0 0.0
    %675 = vmatpush1.msra.mxu0 0.0
    %676 = vmatprep.subr.mxu0 0.0
    %677 = vmatpush1.msra.mxu0 0.0
    %678 = vmatprep.subr.mxu0 0.0
    %679 = vmatpush1.msra.mxu0 0.0
    %680 = vmatprep.subr.mxu0 0.0
    %681 = vmatpush1.msra.mxu0 0.0
    %682 = vmatprep.subr.mxu0 0.0
    %683 = vmatpush1.msra.mxu0 0.0
    %684 = vmatprep.mubr.f32.mxu0 0.0
    %685 = vmatmul.mubr.f32.gmra.mrb[0].mxu0 %v618
    %v686 = vpop.f32.mrb[0].mxu0
    %v687 = vadd.f32 0.0, %v686
    %v688 = vpop.f32.mrb[0].mxu0
    %689 = vdwg.mxu0
    %690 = vst.msk [vmem:[#allocation2] sm:$0xff] %vm360, %v614
    %691 = vst.msk [vmem:[#allocation2 + $0x8] sm:$0xff] %vm360, %v687
    %692 = vrot.lane.b32.xlu0 %v116, 120
    %v693 = vpop.permute.xlu0 %692
    %694 = vrot.lane.b32.xlu0 %v226, 120
    %v695 = vpop.permute.xlu0 %694
    %696 = vrot.lane.b32.xlu0 %v231, 120
    %v697 = vpop.permute.xlu0 %696
    %v698 = vsel %vm360, %v693, 0
    %v700 = vsel %vm360, %v695, 0
    %v702 = vsel %vm360, %v697, 0
    %704 = vmatprep.subr.mxu0 0.0
    %705 = vmatpush1.xpose.msra.mxu0 %v700
    %706 = vmatprep.subr.mxu0 0.0
    %707 = vmatpush1.xpose.msra.mxu0 %v702
    %708 = vmatprep.subr.mxu0 0.0
    %709 = vmatpush1.xpose.msra.mxu0 0.0
    %710 = vmatprep.subr.mxu0 0.0
    %711 = vmatpush1.xpose.msra.mxu0 0.0
    %712 = vmatprep.subr.mxu0 0.0
    %713 = vmatpush1.xpose.msra.mxu0 0.0
    %714 = vmatprep.subr.mxu0 0.0
    %715 = vmatpush1.xpose.msra.mxu0 0.0
    %716 = vmatprep.subr.mxu0 0.0
    %717 = vmatpush1.xpose.msra.mxu0 0.0
    %718 = vmatprep.subr.mxu0 0.0
    %719 = vmatpush1.xpose.msra.mxu0 0.0
    %720 = vmatprep.subr.mxu0 0.0
    %721 = vmatpush1.xpose.msra.mxu0 0.0
    %722 = vmatprep.subr.mxu0 0.0
    %723 = vmatpush1.xpose.msra.mxu0 0.0
    %724 = vmatprep.subr.mxu0 0.0
    %725 = vmatpush1.xpose.msra.mxu0 0.0
    %726 = vmatprep.subr.mxu0 0.0
    %727 = vmatpush1.xpose.msra.mxu0 0.0
    %728 = vmatprep.subr.mxu0 0.0
    %729 = vmatpush1.xpose.msra.mxu0 0.0
    %730 = vmatprep.subr.mxu0 0.0
    %731 = vmatpush1.xpose.msra.mxu0 0.0
    %732 = vmatprep.subr.mxu0 0.0
    %733 = vmatpush1.xpose.msra.mxu0 0.0
    %734 = vmatprep.subr.mxu0 0.0
    %735 = vmatpush1.xpose.msra.mxu0 0.0
    %736 = vmatprep.subr.mxu0 0.0
    %737 = vmatpush1.xpose.msra.mxu0 0.0
    %738 = vmatprep.subr.mxu0 0.0
    %739 = vmatpush1.xpose.msra.mxu0 0.0
    %740 = vmatprep.subr.mxu0 0.0
    %741 = vmatpush1.xpose.msra.mxu0 0.0
    %742 = vmatprep.subr.mxu0 0.0
    %743 = vmatpush1.xpose.msra.mxu0 0.0
    %744 = vmatprep.subr.mxu0 0.0
    %745 = vmatpush1.xpose.msra.mxu0 0.0
    %746 = vmatprep.subr.mxu0 0.0
    %747 = vmatpush1.xpose.msra.mxu0 0.0
    %748 = vmatprep.subr.mxu0 0.0
    %749 = vmatpush1.xpose.msra.mxu0 0.0
    %750 = vmatprep.subr.mxu0 0.0
    %751 = vmatpush1.xpose.msra.mxu0 0.0
    %752 = vmatprep.subr.mxu0 0.0
    %753 = vmatpush1.xpose.msra.mxu0 0.0
    %754 = vmatprep.subr.mxu0 0.0
    %755 = vmatpush1.xpose.msra.mxu0 0.0
    %756 = vmatprep.subr.mxu0 0.0
    %757 = vmatpush1.xpose.msra.mxu0 0.0
    %758 = vmatprep.subr.mxu0 0.0
    %759 = vmatpush1.xpose.msra.mxu0 0.0
    %760 = vmatprep.subr.mxu0 0.0
    %761 = vmatpush1.xpose.msra.mxu0 0.0
    %762 = vmatprep.subr.mxu0 0.0
    %763 = vmatpush1.xpose.msra.mxu0 0.0
    %764 = vmatprep.subr.mxu0 0.0
    %765 = vmatpush1.xpose.msra.mxu0 0.0
    %766 = vmatprep.subr.mxu0 0.0
    %767 = vmatpush1.xpose.msra.mxu0 0.0
    %768 = vmatprep.mubr.f32.mxu0 0.0
    %769 = vmatmul.mubr.f32.gmra.mrb[0].mxu0 %v698
    %v770 = vpop.f32.mrb[0].mxu0
    %v771 = vadd.f32 0.0, %v770
    %v772 = vpop.f32.mrb[0].mxu0
    %773 = vdwg.mxu0
    %774 = vrot.lane.b32.xlu0 %v121, 120
    %v775 = vpop.permute.xlu0 %774
    %776 = vrot.lane.b32.xlu0 %v236, 120
    %v777 = vpop.permute.xlu0 %776
    %778 = vrot.lane.b32.xlu0 %v241, 120
    %v779 = vpop.permute.xlu0 %778
    %v780 = vsel %vm360, %v775, 0
    %v782 = vsel %vm360, %v777, 0
    %v784 = vsel %vm360, %v779, 0
    %786 = vmatprep.subr.mxu0 0.0
    %787 = vmatpush1.xpose.msra.mxu0 %v782
    %788 = vmatprep.subr.mxu0 0.0
    %789 = vmatpush1.xpose.msra.mxu0 %v784
    %790 = vmatprep.subr.mxu0 0.0
    %791 = vmatpush1.xpose.msra.mxu0 0.0
    %792 = vmatprep.subr.mxu0 0.0
    %793 = vmatpush1.xpose.msra.mxu0 0.0
    %794 = vmatprep.subr.mxu0 0.0
    %795 = vmatpush1.xpose.msra.mxu0 0.0
    %796 = vmatprep.subr.mxu0 0.0
    %797 = vmatpush1.xpose.msra.mxu0 0.0
    %798 = vmatprep.subr.mxu0 0.0
    %799 = vmatpush1.xpose.msra.mxu0 0.0
    %800 = vmatprep.subr.mxu0 0.0
    %801 = vmatpush1.xpose.msra.mxu0 0.0
    %802 = vmatprep.subr.mxu0 0.0
    %803 = vmatpush1.xpose.msra.mxu0 0.0
    %804 = vmatprep.subr.mxu0 0.0
    %805 = vmatpush1.xpose.msra.mxu0 0.0
    %806 = vmatprep.subr.mxu0 0.0
    %807 = vmatpush1.xpose.msra.mxu0 0.0
    %808 = vmatprep.subr.mxu0 0.0
    %809 = vmatpush1.xpose.msra.mxu0 0.0
    %810 = vmatprep.subr.mxu0 0.0
    %811 = vmatpush1.xpose.msra.mxu0 0.0
    %812 = vmatprep.subr.mxu0 0.0
    %813 = vmatpush1.xpose.msra.mxu0 0.0
    %814 = vmatprep.subr.mxu0 0.0
    %815 = vmatpush1.xpose.msra.mxu0 0.0
    %816 = vmatprep.subr.mxu0 0.0
    %817 = vmatpush1.xpose.msra.mxu0 0.0
    %818 = vmatprep.subr.mxu0 0.0
    %819 = vmatpush1.xpose.msra.mxu0 0.0
    %820 = vmatprep.subr.mxu0 0.0
    %821 = vmatpush1.xpose.msra.mxu0 0.0
    %822 = vmatprep.subr.mxu0 0.0
    %823 = vmatpush1.xpose.msra.mxu0 0.0
    %824 = vmatprep.subr.mxu0 0.0
    %825 = vmatpush1.xpose.msra.mxu0 0.0
    %826 = vmatprep.subr.mxu0 0.0
    %827 = vmatpush1.xpose.msra.mxu0 0.0
    %828 = vmatprep.subr.mxu0 0.0
    %829 = vmatpush1.xpose.msra.mxu0 0.0
    %830 = vmatprep.subr.mxu0 0.0
    %831 = vmatpush1.xpose.msra.mxu0 0.0
    %832 = vmatprep.subr.mxu0 0.0
    %833 = vmatpush1.xpose.msra.mxu0 0.0
    %834 = vmatprep.subr.mxu0 0.0
    %835 = vmatpush1.xpose.msra.mxu0 0.0
    %836 = vmatprep.subr.mxu0 0.0
    %837 = vmatpush1.xpose.msra.mxu0 0.0
    %838 = vmatprep.subr.mxu0 0.0
    %839 = vmatpush1.xpose.msra.mxu0 0.0
    %840 = vmatprep.subr.mxu0 0.0
    %841 = vmatpush1.xpose.msra.mxu0 0.0
    %842 = vmatprep.subr.mxu0 0.0
    %843 = vmatpush1.xpose.msra.mxu0 0.0
    %844 = vmatprep.subr.mxu0 0.0
    %845 = vmatpush1.xpose.msra.mxu0 0.0
    %846 = vmatprep.subr.mxu0 0.0
    %847 = vmatpush1.xpose.msra.mxu0 0.0
    %848 = vmatprep.subr.mxu0 0.0
    %849 = vmatpush1.xpose.msra.mxu0 0.0
    %850 = vmatprep.mubr.f32.mxu0 0.0
    %851 = vmatmul.mubr.f32.gmra.mrb[0].mxu0 %v780
    %v852 = vpop.f32.mrb[0].mxu0
    %v853 = vadd.f32 0.0, %v852
    %v854 = vpop.f32.mrb[0].mxu0
    %855 = vdwg.mxu0
    %v856 = vsel %vm519, %v771, -inf
    %857 = vmax.xlane.f32.xlu0 %v856
    %v858 = vpop.xlane.xlu0 %857
    %v859 = vsel %vm519, %v853, -inf
    %860 = vmax.xlane.f32.xlu0 %v859
    %v861 = vpop.xlane.xlu0 %860
    %v862 = vsub.f32 %v771, %v858
    %v863 = vsub.f32 %v853, %v861
    %v864 = vmul.f32 %v862, 1.442695
    %v865 = vpow.pop %v864
    %v866 = vmul.f32 %v863, 1.442695
    %v867 = vpow.pop %v866
    %v868 = vsel %vm519, %v865, 0.0
    %869 = vadd.xlane.f32.xlu0 %v868
    %v870 = vpop.xlane.xlu0 %869
    %v871 = vsel %vm519, %v867, 0.0
    %872 = vadd.xlane.f32.xlu0 %v871
    %v873 = vpop.xlane.xlu0 %872
    %v874 = vrcp.pop %v870
    %v875 = vrcp.pop %v873
    %v876 = vmul.f32 %v865, %v874
    %v877 = vmul.f32 %v867, %v875
    %s878 = scalar_lea.vmem [#allocation3], 8
    %879 = vst.msk [vmem:[%s878] sm:$0xff] %vm519, %v876
    %880 = vst.msk [vmem:[%s878 + $0x20] sm:$0xff] %vm519, %v877
    %883 = vrot.lane.b32.xlu0 %v342, 120
    %v884 = vpop.permute.xlu0 %883
    %885 = vrot.lane.b32.xlu0 %v347, 120
    %v886 = vpop.permute.xlu0 %885
    %v890 = vsel %vm519, %v876, 0
    %892 = vmatprep.subr.mxu0 0.0
    %893 = vmatpush1.msra.mxu0 %v884
    %894 = vmatprep.subr.mxu0 0.0
    %895 = vmatpush1.msra.mxu0 %v886
    %896 = vmatprep.subr.mxu0 0.0
    %897 = vmatpush1.msra.mxu0 0.0
    %898 = vmatprep.subr.mxu0 0.0
    %899 = vmatpush1.msra.mxu0 0.0
    %900 = vmatprep.subr.mxu0 0.0
    %901 = vmatpush1.msra.mxu0 0.0
    %902 = vmatprep.subr.mxu0 0.0
    %903 = vmatpush1.msra.mxu0 0.0
    %904 = vmatprep.subr.mxu0 0.0
    %905 = vmatpush1.msra.mxu0 0.0
    %906 = vmatprep.subr.mxu0 0.0
    %907 = vmatpush1.msra.mxu0 0.0
    %908 = vmatprep.subr.mxu0 0.0
    %909 = vmatpush1.msra.mxu0 0.0
    %910 = vmatprep.subr.mxu0 0.0
    %911 = vmatpush1.msra.mxu0 0.0
    %912 = vmatprep.subr.mxu0 0.0
    %913 = vmatpush1.msra.mxu0 0.0
    %914 = vmatprep.subr.mxu0 0.0
    %915 = vmatpush1.msra.mxu0 0.0
    %916 = vmatprep.subr.mxu0 0.0
    %917 = vmatpush1.msra.mxu0 0.0
    %918 = vmatprep.subr.mxu0 0.0
    %919 = vmatpush1.msra.mxu0 0.0
    %920 = vmatprep.subr.mxu0 0.0
    %921 = vmatpush1.msra.mxu0 0.0
    %922 = vmatprep.subr.mxu0 0.0
    %923 = vmatpush1.msra.mxu0 0.0
    %924 = vmatprep.subr.mxu0 0.0
    %925 = vmatpush1.msra.mxu0 0.0
    %926 = vmatprep.subr.mxu0 0.0
    %927 = vmatpush1.msra.mxu0 0.0
    %928 = vmatprep.subr.mxu0 0.0
    %929 = vmatpush1.msra.mxu0 0.0
    %930 = vmatprep.subr.mxu0 0.0
    %931 = vmatpush1.msra.mxu0 0.0
    %932 = vmatprep.subr.mxu0 0.0
    %933 = vmatpush1.msra.mxu0 0.0
    %934 = vmatprep.subr.mxu0 0.0
    %935 = vmatpush1.msra.mxu0 0.0
    %936 = vmatprep.subr.mxu0 0.0
    %937 = vmatpush1.msra.mxu0 0.0
    %938 = vmatprep.subr.mxu0 0.0
    %939 = vmatpush1.msra.mxu0 0.0
    %940 = vmatprep.subr.mxu0 0.0
    %941 = vmatpush1.msra.mxu0 0.0
    %942 = vmatprep.subr.mxu0 0.0
    %943 = vmatpush1.msra.mxu0 0.0
    %944 = vmatprep.subr.mxu0 0.0
    %945 = vmatpush1.msra.mxu0 0.0
    %946 = vmatprep.subr.mxu0 0.0
    %947 = vmatpush1.msra.mxu0 0.0
    %948 = vmatprep.subr.mxu0 0.0
    %949 = vmatpush1.msra.mxu0 0.0
    %950 = vmatprep.subr.mxu0 0.0
    %951 = vmatpush1.msra.mxu0 0.0
    %952 = vmatprep.subr.mxu0 0.0
    %953 = vmatpush1.msra.mxu0 0.0
    %954 = vmatprep.subr.mxu0 0.0
    %955 = vmatpush1.msra.mxu0 0.0
    %956 = vmatprep.mubr.f32.mxu0 0.0
    %957 = vmatmul.mubr.f32.gmra.mrb[0].mxu0 %v890
    %v958 = vpop.f32.mrb[0].mxu0
    %v959 = vadd.f32 0.0, %v958
    %v960 = vpop.f32.mrb[0].mxu0
    %961 = vdwg.mxu0
    %964 = vrot.lane.b32.xlu0 %v352, 120
    %v965 = vpop.permute.xlu0 %964
    %966 = vrot.lane.b32.xlu0 %v357, 120
    %v967 = vpop.permute.xlu0 %966
    %v971 = vsel %vm519, %v877, 0
    %973 = vmatprep.subr.mxu0 0.0
    %974 = vmatpush1.msra.mxu0 %v965
    %975 = vmatprep.subr.mxu0 0.0
    %976 = vmatpush1.msra.mxu0 %v967
    %977 = vmatprep.subr.mxu0 0.0
    %978 = vmatpush1.msra.mxu0 0.0
    %979 = vmatprep.subr.mxu0 0.0
    %980 = vmatpush1.msra.mxu0 0.0
    %981 = vmatprep.subr.mxu0 0.0
    %982 = vmatpush1.msra.mxu0 0.0
    %983 = vmatprep.subr.mxu0 0.0
    %984 = vmatpush1.msra.mxu0 0.0
    %985 = vmatprep.subr.mxu0 0.0
    %986 = vmatpush1.msra.mxu0 0.0
    %987 = vmatprep.subr.mxu0 0.0
    %988 = vmatpush1.msra.mxu0 0.0
    %989 = vmatprep.subr.mxu0 0.0
    %990 = vmatpush1.msra.mxu0 0.0
    %991 = vmatprep.subr.mxu0 0.0
    %992 = vmatpush1.msra.mxu0 0.0
    %993 = vmatprep.subr.mxu0 0.0
    %994 = vmatpush1.msra.mxu0 0.0
    %995 = vmatprep.subr.mxu0 0.0
    %996 = vmatpush1.msra.mxu0 0.0
    %997 = vmatprep.subr.mxu0 0.0
    %998 = vmatpush1.msra.mxu0 0.0
    %999 = vmatprep.subr.mxu0 0.0
    %1000 = vmatpush1.msra.mxu0 0.0
    %1001 = vmatprep.subr.mxu0 0.0
    %1002 = vmatpush1.msra.mxu0 0.0
    %1003 = vmatprep.subr.mxu0 0.0
    %1004 = vmatpush1.msra.mxu0 0.0
    %1005 = vmatprep.subr.mxu0 0.0
    %1006 = vmatpush1.msra.mxu0 0.0
    %1007 = vmatprep.subr.mxu0 0.0
    %1008 = vmatpush1.msra.mxu0 0.0
    %1009 = vmatprep.subr.mxu0 0.0
    %1010 = vmatpush1.msra.mxu0 0.0
    %1011 = vmatprep.subr.mxu0 0.0
    %1012 = vmatpush1.msra.mxu0 0.0
    %1013 = vmatprep.subr.mxu0 0.0
    %1014 = vmatpush1.msra.mxu0 0.0
    %1015 = vmatprep.subr.mxu0 0.0
    %1016 = vmatpush1.msra.mxu0 0.0
    %1017 = vmatprep.subr.mxu0 0.0
    %1018 = vmatpush1.msra.mxu0 0.0
    %1019 = vmatprep.subr.mxu0 0.0
    %1020 = vmatpush1.msra.mxu0 0.0
    %1021 = vmatprep.subr.mxu0 0.0
    %1022 = vmatpush1.msra.mxu0 0.0
    %1023 = vmatprep.subr.mxu0 0.0
    %1024 = vmatpush1.msra.mxu0 0.0
    %1025 = vmatprep.subr.mxu0 0.0
    %1026 = vmatpush1.msra.mxu0 0.0
    %1027 = vmatprep.subr.mxu0 0.0
    %1028 = vmatpush1.msra.mxu0 0.0
    %1029 = vmatprep.subr.mxu0 0.0
    %1030 = vmatpush1.msra.mxu0 0.0
    %1031 = vmatprep.subr.mxu0 0.0
    %1032 = vmatpush1.msra.mxu0 0.0
    %1033 = vmatprep.subr.mxu0 0.0
    %1034 = vmatpush1.msra.mxu0 0.0
    %1035 = vmatprep.subr.mxu0 0.0
    %1036 = vmatpush1.msra.mxu0 0.0
    %1037 = vmatprep.mubr.f32.mxu0 0.0
    %1038 = vmatmul.mubr.f32.gmra.mrb[0].mxu0 %v971
    %v1039 = vpop.f32.mrb[0].mxu0
    %v1040 = vadd.f32 0.0, %v1039
    %v1041 = vpop.f32.mrb[0].mxu0
    %1042 = vdwg.mxu0
    %1045 = vrot.lane.b32.xlu0 %v959, 8
    %v1046 = vpop.permute.xlu0 %1045
    %1047 = vrot.lane.b32.xlu0 %v1040, 8
    %v1048 = vpop.permute.xlu0 %1047
    %vm1051 = vcmask 130112
    %1052 = vst.msk [vmem:[#allocation2] sm:$0xff] %vm1051, %v1046
    %1053 = vst.msk [vmem:[#allocation2 + $0x8] sm:$0xff] %vm1051, %v1048
    %1054 = vrot.lane.b32.xlu0 %v116, 112
    %v1055 = vpop.permute.xlu0 %1054
    %1056 = vrot.lane.b32.xlu0 %v226, 112
    %v1057 = vpop.permute.xlu0 %1056
    %1058 = vrot.lane.b32.xlu0 %v231, 112
    %v1059 = vpop.permute.xlu0 %1058
    %v1060 = vsel %vm360, %v1055, 0
    %v1062 = vsel %vm360, %v1057, 0
    %v1064 = vsel %vm360, %v1059, 0
    %1066 = vmatprep.subr.mxu0 0.0
    %1067 = vmatpush1.xpose.msra.mxu0 %v1062
    %1068 = vmatprep.subr.mxu0 0.0
    %1069 = vmatpush1.xpose.msra.mxu0 %v1064
    %1070 = vmatprep.subr.mxu0 0.0
    %1071 = vmatpush1.xpose.msra.mxu0 0.0
    %1072 = vmatprep.subr.mxu0 0.0
    %1073 = vmatpush1.xpose.msra.mxu0 0.0
    %1074 = vmatprep.subr.mxu0 0.0
    %1075 = vmatpush1.xpose.msra.mxu0 0.0
    %1076 = vmatprep.subr.mxu0 0.0
    %1077 = vmatpush1.xpose.msra.mxu0 0.0
    %1078 = vmatprep.subr.mxu0 0.0
    %1079 = vmatpush1.xpose.msra.mxu0 0.0
    %1080 = vmatprep.subr.mxu0 0.0
    %1081 = vmatpush1.xpose.msra.mxu0 0.0
    %1082 = vmatprep.subr.mxu0 0.0
    %1083 = vmatpush1.xpose.msra.mxu0 0.0
    %1084 = vmatprep.subr.mxu0 0.0
    %1085 = vmatpush1.xpose.msra.mxu0 0.0
    %1086 = vmatprep.subr.mxu0 0.0
    %1087 = vmatpush1.xpose.msra.mxu0 0.0
    %1088 = vmatprep.subr.mxu0 0.0
    %1089 = vmatpush1.xpose.msra.mxu0 0.0
    %1090 = vmatprep.subr.mxu0 0.0
    %1091 = vmatpush1.xpose.msra.mxu0 0.0
    %1092 = vmatprep.subr.mxu0 0.0
    %1093 = vmatpush1.xpose.msra.mxu0 0.0
    %1094 = vmatprep.subr.mxu0 0.0
    %1095 = vmatpush1.xpose.msra.mxu0 0.0
    %1096 = vmatprep.subr.mxu0 0.0
    %1097 = vmatpush1.xpose.msra.mxu0 0.0
    %1098 = vmatprep.subr.mxu0 0.0
    %1099 = vmatpush1.xpose.msra.mxu0 0.0
    %1100 = vmatprep.subr.mxu0 0.0
    %1101 = vmatpush1.xpose.msra.mxu0 0.0
    %1102 = vmatprep.subr.mxu0 0.0
    %1103 = vmatpush1.xpose.msra.mxu0 0.0
    %1104 = vmatprep.subr.mxu0 0.0
    %1105 = vmatpush1.xpose.msra.mxu0 0.0
    %1106 = vmatprep.subr.mxu0 0.0
    %1107 = vmatpush1.xpose.msra.mxu0 0.0
    %1108 = vmatprep.subr.mxu0 0.0
    %1109 = vmatpush1.xpose.msra.mxu0 0.0
    %1110 = vmatprep.subr.mxu0 0.0
    %1111 = vmatpush1.xpose.msra.mxu0 0.0
    %1112 = vmatprep.subr.mxu0 0.0
    %1113 = vmatpush1.xpose.msra.mxu0 0.0
    %1114 = vmatprep.subr.mxu0 0.0
    %1115 = vmatpush1.xpose.msra.mxu0 0.0
    %1116 = vmatprep.subr.mxu0 0.0
    %1117 = vmatpush1.xpose.msra.mxu0 0.0
    %1118 = vmatprep.subr.mxu0 0.0
    %1119 = vmatpush1.xpose.msra.mxu0 0.0
    %1120 = vmatprep.subr.mxu0 0.0
    %1121 = vmatpush1.xpose.msra.mxu0 0.0
    %1122 = vmatprep.subr.mxu0 0.0
    %1123 = vmatpush1.xpose.msra.mxu0 0.0
    %1124 = vmatprep.subr.mxu0 0.0
    %1125 = vmatpush1.xpose.msra.mxu0 0.0
    %1126 = vmatprep.subr.mxu0 0.0
    %1127 = vmatpush1.xpose.msra.mxu0 0.0
    %1128 = vmatprep.subr.mxu0 0.0
    %1129 = vmatpush1.xpose.msra.mxu0 0.0
    %1130 = vmatprep.mubr.f32.mxu0 0.0
    %1131 = vmatmul.mubr.f32.gmra.mrb[0].mxu0 %v1060
    %v1132 = vpop.f32.mrb[0].mxu0
    %v1133 = vadd.f32 0.0, %v1132
    %v1134 = vpop.f32.mrb[0].mxu0
    %1135 = vdwg.mxu0
    %1136 = vrot.lane.b32.xlu0 %v121, 112
    %v1137 = vpop.permute.xlu0 %1136
    %1138 = vrot.lane.b32.xlu0 %v236, 112
    %v1139 = vpop.permute.xlu0 %1138
    %1140 = vrot.lane.b32.xlu0 %v241, 112
    %v1141 = vpop.permute.xlu0 %1140
    %v1142 = vsel %vm360, %v1137, 0
    %v1144 = vsel %vm360, %v1139, 0
    %v1146 = vsel %vm360, %v1141, 0
    %1148 = vmatprep.subr.mxu0 0.0
    %1149 = vmatpush1.xpose.msra.mxu0 %v1144
    %1150 = vmatprep.subr.mxu0 0.0
    %1151 = vmatpush1.xpose.msra.mxu0 %v1146
    %1152 = vmatprep.subr.mxu0 0.0
    %1153 = vmatpush1.xpose.msra.mxu0 0.0
    %1154 = vmatprep.subr.mxu0 0.0
    %1155 = vmatpush1.xpose.msra.mxu0 0.0
    %1156 = vmatprep.subr.mxu0 0.0
    %1157 = vmatpush1.xpose.msra.mxu0 0.0
    %1158 = vmatprep.subr.mxu0 0.0
    %1159 = vmatpush1.xpose.msra.mxu0 0.0
    %1160 = vmatprep.subr.mxu0 0.0
    %1161 = vmatpush1.xpose.msra.mxu0 0.0
    %1162 = vmatprep.subr.mxu0 0.0
    %1163 = vmatpush1.xpose.msra.mxu0 0.0
    %1164 = vmatprep.subr.mxu0 0.0
    %1165 = vmatpush1.xpose.msra.mxu0 0.0
    %1166 = vmatprep.subr.mxu0 0.0
    %1167 = vmatpush1.xpose.msra.mxu0 0.0
    %1168 = vmatprep.subr.mxu0 0.0
    %1169 = vmatpush1.xpose.msra.mxu0 0.0
    %1170 = vmatprep.subr.mxu0 0.0
    %1171 = vmatpush1.xpose.msra.mxu0 0.0
    %1172 = vmatprep.subr.mxu0 0.0
    %1173 = vmatpush1.xpose.msra.mxu0 0.0
    %1174 = vmatprep.subr.mxu0 0.0
    %1175 = vmatpush1.xpose.msra.mxu0 0.0
    %1176 = vmatprep.subr.mxu0 0.0
    %1177 = vmatpush1.xpose.msra.mxu0 0.0
    %1178 = vmatprep.subr.mxu0 0.0
    %1179 = vmatpush1.xpose.msra.mxu0 0.0
    %1180 = vmatprep.subr.mxu0 0.0
    %1181 = vmatpush1.xpose.msra.mxu0 0.0
    %1182 = vmatprep.subr.mxu0 0.0
    %1183 = vmatpush1.xpose.msra.mxu0 0.0
    %1184 = vmatprep.subr.mxu0 0.0
    %1185 = vmatpush1.xpose.msra.mxu0 0.0
    %1186 = vmatprep.subr.mxu0 0.0
    %1187 = vmatpush1.xpose.msra.mxu0 0.0
    %1188 = vmatprep.subr.mxu0 0.0
    %1189 = vmatpush1.xpose.msra.mxu0 0.0
    %1190 = vmatprep.subr.mxu0 0.0
    %1191 = vmatpush1.xpose.msra.mxu0 0.0
    %1192 = vmatprep.subr.mxu0 0.0
    %1193 = vmatpush1.xpose.msra.mxu0 0.0
    %1194 = vmatprep.subr.mxu0 0.0
    %1195 = vmatpush1.xpose.msra.mxu0 0.0
    %1196 = vmatprep.subr.mxu0 0.0
    %1197 = vmatpush1.xpose.msra.mxu0 0.0
    %1198 = vmatprep.subr.mxu0 0.0
    %1199 = vmatpush1.xpose.msra.mxu0 0.0
    %1200 = vmatprep.subr.mxu0 0.0
    %1201 = vmatpush1.xpose.msra.mxu0 0.0
    %1202 = vmatprep.subr.mxu0 0.0
    %1203 = vmatpush1.xpose.msra.mxu0 0.0
    %1204 = vmatprep.subr.mxu0 0.0
    %1205 = vmatpush1.xpose.msra.mxu0 0.0
    %1206 = vmatprep.subr.mxu0 0.0
    %1207 = vmatpush1.xpose.msra.mxu0 0.0
    %1208 = vmatprep.subr.mxu0 0.0
    %1209 = vmatpush1.xpose.msra.mxu0 0.0
    %1210 = vmatprep.subr.mxu0 0.0
    %1211 = vmatpush1.xpose.msra.mxu0 0.0
    %1212 = vmatprep.mubr.f32.mxu0 0.0
    %1213 = vmatmul.mubr.f32.gmra.mrb[0].mxu0 %v1142
    %v1214 = vpop.f32.mrb[0].mxu0
    %v1215 = vadd.f32 0.0, %v1214
    %v1216 = vpop.f32.mrb[0].mxu0
    %1217 = vdwg.mxu0
    %v1218 = vsel %vm519, %v1133, -inf
    %1219 = vmax.xlane.f32.xlu0 %v1218
    %v1220 = vpop.xlane.xlu0 %1219
    %v1221 = vsel %vm519, %v1215, -inf
    %1222 = vmax.xlane.f32.xlu0 %v1221
    %v1223 = vpop.xlane.xlu0 %1222
    %v1224 = vsub.f32 %v1133, %v1220
    %v1225 = vsub.f32 %v1215, %v1223
    %v1226 = vmul.f32 %v1224, 1.442695
    %v1227 = vpow.pop %v1226
    %v1228 = vmul.f32 %v1225, 1.442695
    %v1229 = vpow.pop %v1228
    %v1230 = vsel %vm519, %v1227, 0.0
    %1231 = vadd.xlane.f32.xlu0 %v1230
    %v1232 = vpop.xlane.xlu0 %1231
    %v1233 = vsel %vm519, %v1229, 0.0
    %1234 = vadd.xlane.f32.xlu0 %v1233
    %v1235 = vpop.xlane.xlu0 %1234
    %v1236 = vrcp.pop %v1232
    %v1237 = vrcp.pop %v1235
    %v1238 = vmul.f32 %v1227, %v1236
    %v1239 = vmul.f32 %v1229, %v1237
    %s1240 = scalar_lea.vmem [#allocation3], 16
    %1241 = vst.msk [vmem:[%s1240] sm:$0xff] %vm519, %v1238
    %1242 = vst.msk [vmem:[%s1240 + $0x20] sm:$0xff] %vm519, %v1239
    %1243 = vrot.lane.b32.xlu0 %v342, 112
    %v1244 = vpop.permute.xlu0 %1243
    %1245 = vrot.lane.b32.xlu0 %v347, 112
    %v1246 = vpop.permute.xlu0 %1245
    %v1250 = vsel %vm519, %v1238, 0
    %1252 = vmatprep.subr.mxu0 0.0
    %1253 = vmatpush1.msra.mxu0 %v1244
    %1254 = vmatprep.subr.mxu0 0.0
    %1255 = vmatpush1.msra.mxu0 %v1246
    %1256 = vmatprep.subr.mxu0 0.0
    %1257 = vmatpush1.msra.mxu0 0.0
    %1258 = vmatprep.subr.mxu0 0.0
    %1259 = vmatpush1.msra.mxu0 0.0
    %1260 = vmatprep.subr.mxu0 0.0
    %1261 = vmatpush1.msra.mxu0 0.0
    %1262 = vmatprep.subr.mxu0 0.0
    %1263 = vmatpush1.msra.mxu0 0.0
    %1264 = vmatprep.subr.mxu0 0.0
    %1265 = vmatpush1.msra.mxu0 0.0
    %1266 = vmatprep.subr.mxu0 0.0
    %1267 = vmatpush1.msra.mxu0 0.0
    %1268 = vmatprep.subr.mxu0 0.0
    %1269 = vmatpush1.msra.mxu0 0.0
    %1270 = vmatprep.subr.mxu0 0.0
    %1271 = vmatpush1.msra.mxu0 0.0
    %1272 = vmatprep.subr.mxu0 0.0
    %1273 = vmatpush1.msra.mxu0 0.0
    %1274 = vmatprep.subr.mxu0 0.0
    %1275 = vmatpush1.msra.mxu0 0.0
    %1276 = vmatprep.subr.mxu0 0.0
    %1277 = vmatpush1.msra.mxu0 0.0
    %1278 = vmatprep.subr.mxu0 0.0
    %1279 = vmatpush1.msra.mxu0 0.0
    %1280 = vmatprep.subr.mxu0 0.0
    %1281 = vmatpush1.msra.mxu0 0.0
    %1282 = vmatprep.subr.mxu0 0.0
    %1283 = vmatpush1.msra.mxu0 0.0
    %1284 = vmatprep.subr.mxu0 0.0
    %1285 = vmatpush1.msra.mxu0 0.0
    %1286 = vmatprep.subr.mxu0 0.0
    %1287 = vmatpush1.msra.mxu0 0.0
    %1288 = vmatprep.subr.mxu0 0.0
    %1289 = vmatpush1.msra.mxu0 0.0
    %1290 = vmatprep.subr.mxu0 0.0
    %1291 = vmatpush1.msra.mxu0 0.0
    %1292 = vmatprep.subr.mxu0 0.0
    %1293 = vmatpush1.msra.mxu0 0.0
    %1294 = vmatprep.subr.mxu0 0.0
    %1295 = vmatpush1.msra.mxu0 0.0
    %1296 = vmatprep.subr.mxu0 0.0
    %1297 = vmatpush1.msra.mxu0 0.0
    %1298 = vmatprep.subr.mxu0 0.0
    %1299 = vmatpush1.msra.mxu0 0.0
    %1300 = vmatprep.subr.mxu0 0.0
    %1301 = vmatpush1.msra.mxu0 0.0
    %1302 = vmatprep.subr.mxu0 0.0
    %1303 = vmatpush1.msra.mxu0 0.0
    %1304 = vmatprep.subr.mxu0 0.0
    %1305 = vmatpush1.msra.mxu0 0.0
    %1306 = vmatprep.subr.mxu0 0.0
    %1307 = vmatpush1.msra.mxu0 0.0
    %1308 = vmatprep.subr.mxu0 0.0
    %1309 = vmatpush1.msra.mxu0 0.0
    %1310 = vmatprep.subr.mxu0 0.0
    %1311 = vmatpush1.msra.mxu0 0.0
    %1312 = vmatprep.subr.mxu0 0.0
    %1313 = vmatpush1.msra.mxu0 0.0
    %1314 = vmatprep.subr.mxu0 0.0
    %1315 = vmatpush1.msra.mxu0 0.0
    %1316 = vmatprep.mubr.f32.mxu0 0.0
    %1317 = vmatmul.mubr.f32.gmra.mrb[0].mxu0 %v1250
    %v1318 = vpop.f32.mrb[0].mxu0
    %v1319 = vadd.f32 0.0, %v1318
    %v1320 = vpop.f32.mrb[0].mxu0
    %1321 = vdwg.mxu0
    %1322 = vrot.lane.b32.xlu0 %v352, 112
    %v1323 = vpop.permute.xlu0 %1322
    %1324 = vrot.lane.b32.xlu0 %v357, 112
    %v1325 = vpop.permute.xlu0 %1324
    %v1329 = vsel %vm519, %v1239, 0
    %1331 = vmatprep.subr.mxu0 0.0
    %1332 = vmatpush1.msra.mxu0 %v1323
    %1333 = vmatprep.subr.mxu0 0.0
    %1334 = vmatpush1.msra.mxu0 %v1325
    %1335 = vmatprep.subr.mxu0 0.0
    %1336 = vmatpush1.msra.mxu0 0.0
    %1337 = vmatprep.subr.mxu0 0.0
    %1338 = vmatpush1.msra.mxu0 0.0
    %1339 = vmatprep.subr.mxu0 0.0
    %1340 = vmatpush1.msra.mxu0 0.0
    %1341 = vmatprep.subr.mxu0 0.0
    %1342 = vmatpush1.msra.mxu0 0.0
    %1343 = vmatprep.subr.mxu0 0.0
    %1344 = vmatpush1.msra.mxu0 0.0
    %1345 = vmatprep.subr.mxu0 0.0
    %1346 = vmatpush1.msra.mxu0 0.0
    %1347 = vmatprep.subr.mxu0 0.0
    %1348 = vmatpush1.msra.mxu0 0.0
    %1349 = vmatprep.subr.mxu0 0.0
    %1350 = vmatpush1.msra.mxu0 0.0
    %1351 = vmatprep.subr.mxu0 0.0
    %1352 = vmatpush1.msra.mxu0 0.0
    %1353 = vmatprep.subr.mxu0 0.0
    %1354 = vmatpush1.msra.mxu0 0.0
    %1355 = vmatprep.subr.mxu0 0.0
    %1356 = vmatpush1.msra.mxu0 0.0
    %1357 = vmatprep.subr.mxu0 0.0
    %1358 = vmatpush1.msra.mxu0 0.0
    %1359 = vmatprep.subr.mxu0 0.0
    %1360 = vmatpush1.msra.mxu0 0.0
    %1361 = vmatprep.subr.mxu0 0.0
    %1362 = vmatpush1.msra.mxu0 0.0
    %1363 = vmatprep.subr.mxu0 0.0
    %1364 = vmatpush1.msra.mxu0 0.0
    %1365 = vmatprep.subr.mxu0 0.0
    %1366 = vmatpush1.msra.mxu0 0.0
    %1367 = vmatprep.subr.mxu0 0.0
    %1368 = vmatpush1.msra.mxu0 0.0
    %1369 = vmatprep.subr.mxu0 0.0
    %1370 = vmatpush1.msra.mxu0 0.0
    %1371 = vmatprep.subr.mxu0 0.0
    %1372 = vmatpush1.msra.mxu0 0.0
    %1373 = vmatprep.subr.mxu0 0.0
    %1374 = vmatpush1.msra.mxu0 0.0
    %1375 = vmatprep.subr.mxu0 0.0
    %1376 = vmatpush1.msra.mxu0 0.0
    %1377 = vmatprep.subr.mxu0 0.0
    %1378 = vmatpush1.msra.mxu0 0.0
    %1379 = vmatprep.subr.mxu0 0.0
    %1380 = vmatpush1.msra.mxu0 0.0
    %1381 = vmatprep.subr.mxu0 0.0
    %1382 = vmatpush1.msra.mxu0 0.0
    %1383 = vmatprep.subr.mxu0 0.0
    %1384 = vmatpush1.msra.mxu0 0.0
    %1385 = vmatprep.subr.mxu0 0.0
    %1386 = vmatpush1.msra.mxu0 0.0
    %1387 = vmatprep.subr.mxu0 0.0
    %1388 = vmatpush1.msra.mxu0 0.0
    %1389 = vmatprep.subr.mxu0 0.0
    %1390 = vmatpush1.msra.mxu0 0.0
    %1391 = vmatprep.subr.mxu0 0.0
    %1392 = vmatpush1.msra.mxu0 0.0
    %1393 = vmatprep.subr.mxu0 0.0
    %1394 = vmatpush1.msra.mxu0 0.0
    %1395 = vmatprep.mubr.f32.mxu0 0.0
    %1396 = vmatmul.mubr.f32.gmra.mrb[0].mxu0 %v1329
    %v1397 = vpop.f32.mrb[0].mxu0
    %v1398 = vadd.f32 0.0, %v1397
    %v1399 = vpop.f32.mrb[0].mxu0
    %1400 = vdwg.mxu0
    %1403 = vrot.lane.b32.xlu0 %v1319, 16
    %v1404 = vpop.permute.xlu0 %1403
    %1405 = vrot.lane.b32.xlu0 %v1398, 16
    %v1406 = vpop.permute.xlu0 %1405
    %vm1409 = vcmask 195712
    %1410 = vst.msk [vmem:[#allocation2] sm:$0xff] %vm1409, %v1404
    %1411 = vst.msk [vmem:[#allocation2 + $0x8] sm:$0xff] %vm1409, %v1406
    %1412 = vrot.lane.b32.xlu0 %v116, 104
    %v1413 = vpop.permute.xlu0 %1412
    %1414 = vrot.lane.b32.xlu0 %v226, 104
    %v1415 = vpop.permute.xlu0 %1414
    %1416 = vrot.lane.b32.xlu0 %v231, 104
    %v1417 = vpop.permute.xlu0 %1416
    %v1418 = vsel %vm360, %v1413, 0
    %v1420 = vsel %vm360, %v1415, 0
    %v1422 = vsel %vm360, %v1417, 0
    %1424 = vmatprep.subr.mxu0 0.0
    %1425 = vmatpush1.xpose.msra.mxu0 %v1420
    %1426 = vmatprep.subr.mxu0 0.0
    %1427 = vmatpush1.xpose.msra.mxu0 %v1422
    %1428 = vmatprep.subr.mxu0 0.0
    %1429 = vmatpush1.xpose.msra.mxu0 0.0
    %1430 = vmatprep.subr.mxu0 0.0
    %1431 = vmatpush1.xpose.msra.mxu0 0.0
    %1432 = vmatprep.subr.mxu0 0.0
    %1433 = vmatpush1.xpose.msra.mxu0 0.0
    %1434 = vmatprep.subr.mxu0 0.0
    %1435 = vmatpush1.xpose.msra.mxu0 0.0
    %1436 = vmatprep.subr.mxu0 0.0
    %1437 = vmatpush1.xpose.msra.mxu0 0.0
    %1438 = vmatprep.subr.mxu0 0.0
    %1439 = vmatpush1.xpose.msra.mxu0 0.0
    %1440 = vmatprep.subr.mxu0 0.0
    %1441 = vmatpush1.xpose.msra.mxu0 0.0
    %1442 = vmatprep.subr.mxu0 0.0
    %1443 = vmatpush1.xpose.msra.mxu0 0.0
    %1444 = vmatprep.subr.mxu0 0.0
    %1445 = vmatpush1.xpose.msra.mxu0 0.0
    %1446 = vmatprep.subr.mxu0 0.0
    %1447 = vmatpush1.xpose.msra.mxu0 0.0
    %1448 = vmatprep.subr.mxu0 0.0
    %1449 = vmatpush1.xpose.msra.mxu0 0.0
    %1450 = vmatprep.subr.mxu0 0.0
    %1451 = vmatpush1.xpose.msra.mxu0 0.0
    %1452 = vmatprep.subr.mxu0 0.0
    %1453 = vmatpush1.xpose.msra.mxu0 0.0
    %1454 = vmatprep.subr.mxu0 0.0
    %1455 = vmatpush1.xpose.msra.mxu0 0.0
    %1456 = vmatprep.subr.mxu0 0.0
    %1457 = vmatpush1.xpose.msra.mxu0 0.0
    %1458 = vmatprep.subr.mxu0 0.0
    %1459 = vmatpush1.xpose.msra.mxu0 0.0
    %1460 = vmatprep.subr.mxu0 0.0
    %1461 = vmatpush1.xpose.msra.mxu0 0.0
    %1462 = vmatprep.subr.mxu0 0.0
    %1463 = vmatpush1.xpose.msra.mxu0 0.0
    %1464 = vmatprep.subr.mxu0 0.0
    %1465 = vmatpush1.xpose.msra.mxu0 0.0
    %1466 = vmatprep.subr.mxu0 0.0
    %1467 = vmatpush1.xpose.msra.mxu0 0.0
    %1468 = vmatprep.subr.mxu0 0.0
    %1469 = vmatpush1.xpose.msra.mxu0 0.0
    %1470 = vmatprep.subr.mxu0 0.0
    %1471 = vmatpush1.xpose.msra.mxu0 0.0
    %1472 = vmatprep.subr.mxu0 0.0
    %1473 = vmatpush1.xpose.msra.mxu0 0.0
    %1474 = vmatprep.subr.mxu0 0.0
    %1475 = vmatpush1.xpose.msra.mxu0 0.0
    %1476 = vmatprep.subr.mxu0 0.0
    %1477 = vmatpush1.xpose.msra.mxu0 0.0
    %1478 = vmatprep.subr.mxu0 0.0
    %1479 = vmatpush1.xpose.msra.mxu0 0.0
    %1480 = vmatprep.subr.mxu0 0.0
    %1481 = vmatpush1.xpose.msra.mxu0 0.0
    %1482 = vmatprep.subr.mxu0 0.0
    %1483 = vmatpush1.xpose.msra.mxu0 0.0
    %1484 = vmatprep.subr.mxu0 0.0
    %1485 = vmatpush1.xpose.msra.mxu0 0.0
    %1486 = vmatprep.subr.mxu0 0.0
    %1487 = vmatpush1.xpose.msra.mxu0 0.0
    %1488 = vmatprep.mubr.f32.mxu0 0.0
    %1489 = vmatmul.mubr.f32.gmra.mrb[0].mxu0 %v1418
    %v1490 = vpop.f32.mrb[0].mxu0
    %v1491 = vadd.f32 0.0, %v1490
    %v1492 = vpop.f32.mrb[0].mxu0
    %1493 = vdwg.mxu0
    %1494 = vrot.lane.b32.xlu0 %v121, 104
    %v1495 = vpop.permute.xlu0 %1494
    %1496 = vrot.lane.b32.xlu0 %v236, 104
    %v1497 = vpop.permute.xlu0 %1496
    %1498 = vrot.lane.b32.xlu0 %v241, 104
    %v1499 = vpop.permute.xlu0 %1498
    %v1500 = vsel %vm360, %v1495, 0
    %v1502 = vsel %vm360, %v1497, 0
    %v1504 = vsel %vm360, %v1499, 0
    %1506 = vmatprep.subr.mxu0 0.0
    %1507 = vmatpush1.xpose.msra.mxu0 %v1502
    %1508 = vmatprep.subr.mxu0 0.0
    %1509 = vmatpush1.xpose.msra.mxu0 %v1504
    %1510 = vmatprep.subr.mxu0 0.0
    %1511 = vmatpush1.xpose.msra.mxu0 0.0
    %1512 = vmatprep.subr.mxu0 0.0
    %1513 = vmatpush1.xpose.msra.mxu0 0.0
    %1514 = vmatprep.subr.mxu0 0.0
    %1515 = vmatpush1.xpose.msra.mxu0 0.0
    %1516 = vmatprep.subr.mxu0 0.0
    %1517 = vmatpush1.xpose.msra.mxu0 0.0
    %1518 = vmatprep.subr.mxu0 0.0
    %1519 = vmatpush1.xpose.msra.mxu0 0.0
    %1520 = vmatprep.subr.mxu0 0.0
    %1521 = vmatpush1.xpose.msra.mxu0 0.0
    %1522 = vmatprep.subr.mxu0 0.0
    %1523 = vmatpush1.xpose.msra.mxu0 0.0
    %1524 = vmatprep.subr.mxu0 0.0
    %1525 = vmatpush1.xpose.msra.mxu0 0.0
    %1526 = vmatprep.subr.mxu0 0.0
    %1527 = vmatpush1.xpose.msra.mxu0 0.0
    %1528 = vmatprep.subr.mxu0 0.0
    %1529 = vmatpush1.xpose.msra.mxu0 0.0
    %1530 = vmatprep.subr.mxu0 0.0
    %1531 = vmatpush1.xpose.msra.mxu0 0.0
    %1532 = vmatprep.subr.mxu0 0.0
    %1533 = vmatpush1.xpose.msra.mxu0 0.0
    %1534 = vmatprep.subr.mxu0 0.0
    %1535 = vmatpush1.xpose.msra.mxu0 0.0
    %1536 = vmatprep.subr.mxu0 0.0
    %1537 = vmatpush1.xpose.msra.mxu0 0.0
    %1538 = vmatprep.subr.mxu0 0.0
    %1539 = vmatpush1.xpose.msra.mxu0 0.0
    %1540 = vmatprep.subr.mxu0 0.0
    %1541 = vmatpush1.xpose.msra.mxu0 0.0
    %1542 = vmatprep.subr.mxu0 0.0
    %1543 = vmatpush1.xpose.msra.mxu0 0.0
    %1544 = vmatprep.subr.mxu0 0.0
    %1545 = vmatpush1.xpose.msra.mxu0 0.0
    %1546 = vmatprep.subr.mxu0 0.0
    %1547 = vmatpush1.xpose.msra.mxu0 0.0
    %1548 = vmatprep.subr.mxu0 0.0
    %1549 = vmatpush1.xpose.msra.mxu0 0.0
    %1550 = vmatprep.subr.mxu0 0.0
    %1551 = vmatpush1.xpose.msra.mxu0 0.0
    %1552 = vmatprep.subr.mxu0 0.0
    %1553 = vmatpush1.xpose.msra.mxu0 0.0
    %1554 = vmatprep.subr.mxu0 0.0
    %1555 = vmatpush1.xpose.msra.mxu0 0.0
    %1556 = vmatprep.subr.mxu0 0.0
    %1557 = vmatpush1.xpose.msra.mxu0 0.0
    %1558 = vmatprep.subr.mxu0 0.0
    %1559 = vmatpush1.xpose.msra.mxu0 0.0
    %1560 = vmatprep.subr.mxu0 0.0
    %1561 = vmatpush1.xpose.msra.mxu0 0.0
    %1562 = vmatprep.subr.mxu0 0.0
    %1563 = vmatpush1.xpose.msra.mxu0 0.0
    %1564 = vmatprep.subr.mxu0 0.0
    %1565 = vmatpush1.xpose.msra.mxu0 0.0
    %1566 = vmatprep.subr.mxu0 0.0
    %1567 = vmatpush1.xpose.msra.mxu0 0.0
    %1568 = vmatprep.subr.mxu0 0.0
    %1569 = vmatpush1.xpose.msra.mxu0 0.0
    %1570 = vmatprep.mubr.f32.mxu0 0.0
    %1571 = vmatmul.mubr.f32.gmra.mrb[0].mxu0 %v1500
    %v1572 = vpop.f32.mrb[0].mxu0
    %v1573 = vadd.f32 0.0, %v1572
    %v1574 = vpop.f32.mrb[0].mxu0
    %1575 = vdwg.mxu0
    %v1576 = vsel %vm519, %v1491, -inf
    %1577 = vmax.xlane.f32.xlu0 %v1576
    %v1578 = vpop.xlane.xlu0 %1577
    %v1579 = vsel %vm519, %v1573, -inf
    %1580 = vmax.xlane.f32.xlu0 %v1579
    %v1581 = vpop.xlane.xlu0 %1580
    %v1582 = vsub.f32 %v1491, %v1578
    %v1583 = vsub.f32 %v1573, %v1581
    %v1584 = vmul.f32 %v1582, 1.442695
    %v1585 = vpow.pop %v1584
    %v1586 = vmul.f32 %v1583, 1.442695
    %v1587 = vpow.pop %v1586
    %v1588 = vsel %vm519, %v1585, 0.0
    %1589 = vadd.xlane.f32.xlu0 %v1588
    %v1590 = vpop.xlane.xlu0 %1589
    %v1591 = vsel %vm519, %v1587, 0.0
    %1592 = vadd.xlane.f32.xlu0 %v1591
    %v1593 = vpop.xlane.xlu0 %1592
    %v1594 = vrcp.pop %v1590
    %v1595 = vrcp.pop %v1593
    %v1596 = vmul.f32 %v1585, %v1594
    %v1597 = vmul.f32 %v1587, %v1595
    %s1598 = scalar_lea.vmem [#allocation3], 24
    %1599 = vst.msk [vmem:[%s1598] sm:$0xff] %vm519, %v1596
    %1600 = vst.msk [vmem:[%s1598 + $0x20] sm:$0xff] %vm519, %v1597
    %1601 = vrot.lane.b32.xlu0 %v342, 104
    %v1602 = vpop.permute.xlu0 %1601
    %1603 = vrot.lane.b32.xlu0 %v347, 104
    %v1604 = vpop.permute.xlu0 %1603
    %v1608 = vsel %vm519, %v1596, 0
    %1610 = vmatprep.subr.mxu0 0.0
    %1611 = vmatpush1.msra.mxu0 %v1602
    %1612 = vmatprep.subr.mxu0 0.0
    %1613 = vmatpush1.msra.mxu0 %v1604
    %1614 = vmatprep.subr.mxu0 0.0
    %1615 = vmatpush1.msra.mxu0 0.0
    %1616 = vmatprep.subr.mxu0 0.0
    %1617 = vmatpush1.msra.mxu0 0.0
    %1618 = vmatprep.subr.mxu0 0.0
    %1619 = vmatpush1.msra.mxu0 0.0
    %1620 = vmatprep.subr.mxu0 0.0
    %1621 = vmatpush1.msra.mxu0 0.0
    %1622 = vmatprep.subr.mxu0 0.0
    %1623 = vmatpush1.msra.mxu0 0.0
    %1624 = vmatprep.subr.mxu0 0.0
    %1625 = vmatpush1.msra.mxu0 0.0
    %1626 = vmatprep.subr.mxu0 0.0
    %1627 = vmatpush1.msra.mxu0 0.0
    %1628 = vmatprep.subr.mxu0 0.0
    %1629 = vmatpush1.msra.mxu0 0.0
    %1630 = vmatprep.subr.mxu0 0.0
    %1631 = vmatpush1.msra.mxu0 0.0
    %1632 = vmatprep.subr.mxu0 0.0
    %1633 = vmatpush1.msra.mxu0 0.0
    %1634 = vmatprep.subr.mxu0 0.0
    %1635 = vmatpush1.msra.mxu0 0.0
    %1636 = vmatprep.subr.mxu0 0.0
    %1637 = vmatpush1.msra.mxu0 0.0
    %1638 = vmatprep.subr.mxu0 0.0
    %1639 = vmatpush1.msra.mxu0 0.0
    %1640 = vmatprep.subr.mxu0 0.0
    %1641 = vmatpush1.msra.mxu0 0.0
    %1642 = vmatprep.subr.mxu0 0.0
    %1643 = vmatpush1.msra.mxu0 0.0
    %1644 = vmatprep.subr.mxu0 0.0
    %1645 = vmatpush1.msra.mxu0 0.0
    %1646 = vmatprep.subr.mxu0 0.0
    %1647 = vmatpush1.msra.mxu0 0.0
    %1648 = vmatprep.subr.mxu0 0.0
    %1649 = vmatpush1.msra.mxu0 0.0
    %1650 = vmatprep.subr.mxu0 0.0
    %1651 = vmatpush1.msra.mxu0 0.0
    %1652 = vmatprep.subr.mxu0 0.0
    %1653 = vmatpush1.msra.mxu0 0.0
    %1654 = vmatprep.subr.mxu0 0.0
    %1655 = vmatpush1.msra.mxu0 0.0
    %1656 = vmatprep.subr.mxu0 0.0
    %1657 = vmatpush1.msra.mxu0 0.0
    %1658 = vmatprep.subr.mxu0 0.0
    %1659 = vmatpush1.msra.mxu0 0.0
    %1660 = vmatprep.subr.mxu0 0.0
    %1661 = vmatpush1.msra.mxu0 0.0
    %1662 = vmatprep.subr.mxu0 0.0
    %1663 = vmatpush1.msra.mxu0 0.0
    %1664 = vmatprep.subr.mxu0 0.0
    %1665 = vmatpush1.msra.mxu0 0.0
    %1666 = vmatprep.subr.mxu0 0.0
    %1667 = vmatpush1.msra.mxu0 0.0
    %1668 = vmatprep.subr.mxu0 0.0
    %1669 = vmatpush1.msra.mxu0 0.0
    %1670 = vmatprep.subr.mxu0 0.0
    %1671 = vmatpush1.msra.mxu0 0.0
    %1672 = vmatprep.subr.mxu0 0.0
    %1673 = vmatpush1.msra.mxu0 0.0
    %1674 = vmatprep.mubr.f32.mxu0 0.0
    %1675 = vmatmul.mubr.f32.gmra.mrb[0].mxu0 %v1608
    %v1676 = vpop.f32.mrb[0].mxu0
    %v1677 = vadd.f32 0.0, %v1676
    %v1678 = vpop.f32.mrb[0].mxu0
    %1679 = vdwg.mxu0
    %1680 = vrot.lane.b32.xlu0 %v352, 104
    %v1681 = vpop.permute.xlu0 %1680
    %1682 = vrot.lane.b32.xlu0 %v357, 104
    %v1683 = vpop.permute.xlu0 %1682
    %v1687 = vsel %vm519, %v1597, 0
    %1689 = vmatprep.subr.mxu0 0.0
    %1690 = vmatpush1.msra.mxu0 %v1681
    %1691 = vmatprep.subr.mxu0 0.0
    %1692 = vmatpush1.msra.mxu0 %v1683
    %1693 = vmatprep.subr.mxu0 0.0
    %1694 = vmatpush1.msra.mxu0 0.0
    %1695 = vmatprep.subr.mxu0 0.0
    %1696 = vmatpush1.msra.mxu0 0.0
    %1697 = vmatprep.subr.mxu0 0.0
    %1698 = vmatpush1.msra.mxu0 0.0
    %1699 = vmatprep.subr.mxu0 0.0
    %1700 = vmatpush1.msra.mxu0 0.0
    %1701 = vmatprep.subr.mxu0 0.0
    %1702 = vmatpush1.msra.mxu0 0.0
    %1703 = vmatprep.subr.mxu0 0.0
    %1704 = vmatpush1.msra.mxu0 0.0
    %1705 = vmatprep.subr.mxu0 0.0
    %1706 = vmatpush1.msra.mxu0 0.0
    %1707 = vmatprep.subr.mxu0 0.0
    %1708 = vmatpush1.msra.mxu0 0.0
    %1709 = vmatprep.subr.mxu0 0.0
    %1710 = vmatpush1.msra.mxu0 0.0
    %1711 = vmatprep.subr.mxu0 0.0
    %1712 = vmatpush1.msra.mxu0 0.0
    %1713 = vmatprep.subr.mxu0 0.0
    %1714 = vmatpush1.msra.mxu0 0.0
    %1715 = vmatprep.subr.mxu0 0.0
    %1716 = vmatpush1.msra.mxu0 0.0
    %1717 = vmatprep.subr.mxu0 0.0
    %1718 = vmatpush1.msra.mxu0 0.0
    %1719 = vmatprep.subr.mxu0 0.0
    %1720 = vmatpush1.msra.mxu0 0.0
    %1721 = vmatprep.subr.mxu0 0.0
    %1722 = vmatpush1.msra.mxu0 0.0
    %1723 = vmatprep.subr.mxu0 0.0
    %1724 = vmatpush1.msra.mxu0 0.0
    %1725 = vmatprep.subr.mxu0 0.0
    %1726 = vmatpush1.msra.mxu0 0.0
    %1727 = vmatprep.subr.mxu0 0.0
    %1728 = vmatpush1.msra.mxu0 0.0
    %1729 = vmatprep.subr.mxu0 0.0
    %1730 = vmatpush1.msra.mxu0 0.0
    %1731 = vmatprep.subr.mxu0 0.0
    %1732 = vmatpush1.msra.mxu0 0.0
    %1733 = vmatprep.subr.mxu0 0.0
    %1734 = vmatpush1.msra.mxu0 0.0
    %1735 = vmatprep.subr.mxu0 0.0
    %1736 = vmatpush1.msra.mxu0 0.0
    %1737 = vmatprep.subr.mxu0 0.0
    %1738 = vmatpush1.msra.mxu0 0.0
    %1739 = vmatprep.subr.mxu0 0.0
    %1740 = vmatpush1.msra.mxu0 0.0
    %1741 = vmatprep.subr.mxu0 0.0
    %1742 = vmatpush1.msra.mxu0 0.0
    %1743 = vmatprep.subr.mxu0 0.0
    %1744 = vmatpush1.msra.mxu0 0.0
    %1745 = vmatprep.subr.mxu0 0.0
    %1746 = vmatpush1.msra.mxu0 0.0
    %1747 = vmatprep.subr.mxu0 0.0
    %1748 = vmatpush1.msra.mxu0 0.0
    %1749 = vmatprep.subr.mxu0 0.0
    %1750 = vmatpush1.msra.mxu0 0.0
    %1751 = vmatprep.subr.mxu0 0.0
    %1752 = vmatpush1.msra.mxu0 0.0
    %1753 = vmatprep.mubr.f32.mxu0 0.0
    %1754 = vmatmul.mubr.f32.gmra.mrb[0].mxu0 %v1687
    %v1755 = vpop.f32.mrb[0].mxu0
    %v1756 = vadd.f32 0.0, %v1755
    %v1757 = vpop.f32.mrb[0].mxu0
    %1758 = vdwg.mxu0
    %1761 = vrot.lane.b32.xlu0 %v1677, 24
    %v1762 = vpop.permute.xlu0 %1761
    %1763 = vrot.lane.b32.xlu0 %v1756, 24
    %v1764 = vpop.permute.xlu0 %1763
    %vm1767 = vcmask 261312
    %1768 = vst.msk [vmem:[#allocation2] sm:$0xff] %vm1767, %v1762
    %1769 = vst.msk [vmem:[#allocation2 + $0x8] sm:$0xff] %vm1767, %v1764
    %v1770 = vld [vmem:[#allocation2] sm:$0xff]
    %v1771 = vld [vmem:[#allocation2 + $0x8] sm:$0xff]
    %v1772 = vld [vmem:[%s5] sm:$0xff]
    %v1773 = vld [vmem:[%s5 + $0x8] sm:$0xff]
    %v1774 = vld [vmem:[%s5 + $0x10] sm:$0xff]
    %v1775 = vld [vmem:[%s5 + $0x18] sm:$0xff]
    %v1776 = vld [vmem:[%s6] sm:$0x1]
    %v1778 = vlaneseq
    %v1779 = vshrl.u32 %v1778, 7
    %v1780 = vsub.s32 0, %v1779
    %v1781 = vrot.slane %v1776, %v1780
    %v1784 = vsel %vm42, %v1770, 0
    %v1787 = vsel %vm42, %v1771, 0
    %1789 = vmatprep.subr.mxu0 0.0
    %1790 = vmatpush1.msra.mxu0 %v1772
    %1791 = vmatprep.subr.mxu0 0.0
    %1792 = vmatpush1.msra.mxu0 %v1773
    %1793 = vmatprep.subr.mxu0 0.0
    %1794 = vmatpush1.msra.mxu0 %v1774
    %1795 = vmatprep.subr.mxu0 0.0
    %1796 = vmatpush1.msra.mxu0 %v1775
    %1797 = vmatprep.subr.mxu0 0.0
    %1798 = vmatpush1.msra.mxu0 0.0
    %1799 = vmatprep.subr.mxu0 0.0
    %1800 = vmatpush1.msra.mxu0 0.0
    %1801 = vmatprep.subr.mxu0 0.0
    %1802 = vmatpush1.msra.mxu0 0.0
    %1803 = vmatprep.subr.mxu0 0.0
    %1804 = vmatpush1.msra.mxu0 0.0
    %1805 = vmatprep.subr.mxu0 0.0
    %1806 = vmatpush1.msra.mxu0 0.0
    %1807 = vmatprep.subr.mxu0 0.0
    %1808 = vmatpush1.msra.mxu0 0.0
    %1809 = vmatprep.subr.mxu0 0.0
    %1810 = vmatpush1.msra.mxu0 0.0
    %1811 = vmatprep.subr.mxu0 0.0
    %1812 = vmatpush1.msra.mxu0 0.0
    %1813 = vmatprep.subr.mxu0 0.0
    %1814 = vmatpush1.msra.mxu0 0.0
    %1815 = vmatprep.subr.mxu0 0.0
    %1816 = vmatpush1.msra.mxu0 0.0
    %1817 = vmatprep.subr.mxu0 0.0
    %1818 = vmatpush1.msra.mxu0 0.0
    %1819 = vmatprep.subr.mxu0 0.0
    %1820 = vmatpush1.msra.mxu0 0.0
    %1821 = vmatprep.subr.mxu0 0.0
    %1822 = vmatpush1.msra.mxu0 0.0
    %1823 = vmatprep.subr.mxu0 0.0
    %1824 = vmatpush1.msra.mxu0 0.0
    %1825 = vmatprep.subr.mxu0 0.0
    %1826 = vmatpush1.msra.mxu0 0.0
    %1827 = vmatprep.subr.mxu0 0.0
    %1828 = vmatpush1.msra.mxu0 0.0
    %1829 = vmatprep.subr.mxu0 0.0
    %1830 = vmatpush1.msra.mxu0 0.0
    %1831 = vmatprep.subr.mxu0 0.0
    %1832 = vmatpush1.msra.mxu0 0.0
    %1833 = vmatprep.subr.mxu0 0.0
    %1834 = vmatpush1.msra.mxu0 0.0
    %1835 = vmatprep.subr.mxu0 0.0
    %1836 = vmatpush1.msra.mxu0 0.0
    %1837 = vmatprep.subr.mxu0 0.0
    %1838 = vmatpush1.msra.mxu0 0.0
    %1839 = vmatprep.subr.mxu0 0.0
    %1840 = vmatpush1.msra.mxu0 0.0
    %1841 = vmatprep.subr.mxu0 0.0
    %1842 = vmatpush1.msra.mxu0 0.0
    %1843 = vmatprep.subr.mxu0 0.0
    %1844 = vmatpush1.msra.mxu0 0.0
    %1845 = vmatprep.subr.mxu0 0.0
    %1846 = vmatpush1.msra.mxu0 0.0
    %1847 = vmatprep.subr.mxu0 0.0
    %1848 = vmatpush1.msra.mxu0 0.0
    %1849 = vmatprep.subr.mxu0 0.0
    %1850 = vmatpush1.msra.mxu0 0.0
    %1851 = vmatprep.subr.mxu0 0.0
    %1852 = vmatpush1.msra.mxu0 0.0
    %1853 = vmatprep.mubr.f32.mxu0 0.0
    %1854 = vmatmul.mubr.f32.gmra.mrb[0].mxu0 %v1784
    %v1855 = vpop.f32.mrb[0].mxu0
    %v1856 = vadd.f32 %v1781, %v1855
    %v1857 = vpop.f32.mrb[0].mxu0
    %1858 = vmatprep.mubr.f32.mxu0 0.0
    %1859 = vmatmul.mubr.f32.gmra.mrb[0].mxu0 %v1787
    %v1860 = vpop.f32.mrb[0].mxu0
    %v1861 = vadd.f32 %v1781, %v1860
    %v1862 = vpop.f32.mrb[0].mxu0
    %1863 = vdwg.mxu0
    %1864 = vst.msk [vmem:[%s7] sm:$0xff] %vm42, %v1856
    %1865 = vst.msk [vmem:[%s7 + $0x8] sm:$0xff] %vm42, %v1861
    // Predicated region
    $region30: #{multihead_attention.1} parent=1 // pred_check
      _
    $region31: #{multihead_attention.1} parent=1 // pred_check_branch
      %1867 = sbr.rel (0) target = $region33
    $region32: #{multihead_attention.1} parent=1 // pred_region
      _
    $region33: #{multihead_attention.1} parent=1 // pred_fallthru
      _
    // Predicated region
    $region34: #{multihead_attention.1} parent=1 // pred_check
      _
    $region35: #{multihead_attention.1} parent=1 // pred_check_branch
      %1869 = sbr.rel (0) target = $region37
    $region36: #{multihead_attention.1} parent=1 // pred_region
      %s1871 = ssub.s32 1024, 1024
      %1872 = vsyncadd [#allocation4], %s1871
      %s1873 = sshll.u32 [#allocation3], 4
      %s1874 = int_to_ptr.vmem [resolvable:$true] %s1873
      %1879 = dma.vmem_to_hbm [thread:$0]  %s1874, 1024, %s8, [#allocation4], 128, 128, 8
    $region37: #{multihead_attention.1} parent=1 // pred_fallthru
      _
    // Predicated region
    $region38: #{multihead_attention.1} parent=1 // pred_check
      _
    $region39: #{multihead_attention.1} parent=1 // pred_check_branch
      %1881 = sbr.rel (0) target = $region41
    $region40: #{multihead_attention.1} parent=1 // pred_region
      _
    $region41: #{multihead_attention.1} parent=1 // pred_fallthru
      _
    // Predicated region
    $region42: #{multihead_attention.1} parent=1 // pred_check
      _
    $region43: #{multihead_attention.1} parent=1 // pred_check_branch
      %1883 = sbr.rel (0) target = $region45
    $region44: #{multihead_attention.1} parent=1 // pred_region
      %1884 = dma.done [#allocation4], 1024
    $region45: #{multihead_attention.1} parent=1 // pred_fallthru
      _
    %1885 = vsyncpa [#allocation4], 1

</llo_original>
